<compile_context>
chip_gen: v5e
topology: v5e:2x2
jax: 0.10.0
libtpu: 0.0.40
codegen_flags: <defaults>
</compile_context>

<pallas_src>
import functools

import jax
import jax.numpy as jnp
from jax.experimental import pallas as pl
from jax.experimental.pallas import tpu as pltpu


def _sublane(dtype):
    """Native sublane multiple for a dtype (f32: 8, bf16: 16, 8-bit: 32)."""
    return {4: 8, 2: 16, 1: 32}.get(jnp.dtype(dtype).itemsize, 8)


@functools.lru_cache(maxsize=1)
def _vmem_budget_bytes():
    """~0.75x of this generation's per-core VMEM (48 MiB on v7x, 96 MiB on v5e/v6e)."""
    cap = None
    try:
        info = pltpu.get_tpu_info()
        cap = getattr(info, "vmem_capacity_bytes", None)
    except Exception:
        cap = None
    if not cap:
        cap = 64 * 1024 * 1024  # conservative floor: v7x per-TensorCore VMEM
    return int(0.75 * int(cap))


def _fixed_vmem_bytes(B, D_in, H1, H2, C, w_itemsize):
    """Non-x VMEM: double-buffered weights/biases/outputs + acc scratch + slack."""
    weights = (D_in * H1 + H1 * H2 + H2 * C) * w_itemsize
    biases = (H1 + H2 + C) * 4
    outs = (B * (2 * C + 1) + B) * 4
    acc = B * H1 * 4
    return 2 * (weights + biases + outs) + acc + (2 << 20)


def _choose_tile_m(B, M, D_in, x_itemsize, fixed_bytes, budget_bytes, sublane):
    """Largest instance tile whose double-buffered x slab + fixed costs fit the budget."""
    x_budget = budget_bytes - fixed_bytes
    row_bytes = B * D_in * x_itemsize

    def fits(t):
        return 2 * t * row_bytes <= x_budget

    if fits(M):
        return M                       # whole bag -> single grid step
    best = None
    # Prefer dtype-sublane-aligned divisors (free in-kernel reshape), then 8-aligned.
    for align in (sublane, 8):
        for t in range(align, M, align):
            if M % t == 0 and fits(t) and (best is None or t > best):
                best = t
        if best is not None:
            break
    if best is None:
        raise ValueError("no instance tile fits the VMEM budget; reduce B or D_in")
    return best


def _phi_sum(x, wphi_ref, bphi_ref):
    """sum_m ReLU(x[:, m, :] @ W_phi + b_phi); x is (B, TM, D_in). Returns f32 (B, H1)."""
    B, TM, D_in = x.shape
    if TM % _sublane(x.dtype) == 0:
        # Sublane-aligned collapse is a free relayout: one tall MXU matmul.
        h = jnp.dot(x.reshape(B * TM, D_in), wphi_ref[...],
                    preferred_element_type=jnp.float32)
        h = jnp.maximum(h + bphi_ref[...], 0.0)
        return jnp.sum(h.reshape(B, TM, -1), axis=1)
    # Unaligned TM: batched matmul avoids a materialized relayout copy.
    h = jnp.einsum("bmd,dh->bmh", x, wphi_ref[...],
                   preferred_element_type=jnp.float32)
    h = jnp.maximum(h + bphi_ref[...], 0.0)
    return jnp.sum(h, axis=1)


def _survival_epilogue(h_sum, wrho_ref, brho_ref, wc_ref, bc_ref, fused_ref, yhat_ref):
    """rho -> classifier -> hazards/S/risks (fused (B,2C+1) store) + y_hat."""
    # rho: Linear(H1, H2) + ReLU (+ Dropout == identity in eval mode).
    hp = jnp.dot(h_sum.astype(wrho_ref.dtype), wrho_ref[...],
                 preferred_element_type=jnp.float32)
    hp = jnp.maximum(hp + brho_ref[...], 0.0)                        # (B, H2) f32

    # classifier: Linear(H2, C)
    logits = jnp.dot(hp.astype(wc_ref.dtype), wc_ref[...],
                     preferred_element_type=jnp.float32) + bc_ref[...]
    C = logits.shape[1]

    hazards = jax.nn.sigmoid(logits)                                 # (B, C)

    # S = cumprod(1 - hazards, axis=1), built in registers (C is small & static).
    one_minus = 1.0 - hazards
    cols = [one_minus[:, 0:1]]
    for j in range(1, C):
        cols.append(cols[-1] * one_minus[:, j:j + 1])
    S = jnp.concatenate(cols, axis=1)                                # (B, C)
    risks = -jnp.sum(S, axis=1, keepdims=True)                       # (B, 1)

    # One dense store: hazards | S | risks.
    fused_ref[...] = jnp.concatenate([hazards, S, risks], axis=1)

    # y_hat = torch.topk(logits, 1, dim=1)[1] == argmax (first occurrence on ties).
    idx = jax.lax.broadcasted_iota(jnp.int32, logits.shape, 1)
    maxv = jnp.max(logits, axis=1, keepdims=True)
    yhat_ref[...] = jnp.min(jnp.where(logits == maxv, idx, jnp.int32(C)),
                            axis=1, keepdims=True)


def _mil_sum_kernel_single(x_ref, wphi_ref, bphi_ref, wrho_ref, brho_ref,
                           wc_ref, bc_ref, fused_ref, yhat_ref):
    """Whole bag in one grid step: no reduction grid, no accumulator scratch."""
    h_sum = _phi_sum(x_ref[...], wphi_ref, bphi_ref)
    _survival_epilogue(h_sum, wrho_ref, brho_ref, wc_ref, bc_ref, fused_ref, yhat_ref)


def _mil_sum_kernel_tiled(x_ref, wphi_ref, bphi_ref, wrho_ref, brho_ref,
                          wc_ref, bc_ref, fused_ref, yhat_ref, acc_ref):
    """Grid axis 0 iterates over instance tiles; acc_ref carries the Deep-Sets sum."""
    m = pl.program_id(0)

    @pl.when(m == 0)
    def _():
        acc_ref[...] = jnp.zeros_like(acc_ref)

    acc_ref[...] += _phi_sum(x_ref[...], wphi_ref, bphi_ref)

    @pl.when(m == pl.num_programs(0) - 1)
    def _():
        _survival_epilogue(acc_ref[...], wrho_ref, brho_ref, wc_ref, bc_ref,
                           fused_ref, yhat_ref)


@functools.partial(jax.jit,
                   static_argnames=("tile_m", "compute_dtype", "vmem_limit_bytes"))
def _mil_sum_fc_surv_impl(x_path, w_phi, b_phi, w_rho, b_rho, w_c, b_c,
                          *, tile_m, compute_dtype, vmem_limit_bytes):
    B, M, D_in = x_path.shape
    H1 = w_phi.shape[1]
    H2 = w_rho.shape[1]
    C = w_c.shape[1]

    # bf16 compute by default (native MXU rate, half the HBM bytes); accumulation
    # stays f32 via preferred_element_type, biases stay f32.
    x_path = x_path.astype(compute_dtype)
    w_phi = w_phi.astype(compute_dtype)
    w_rho = w_rho.astype(compute_dtype)
    w_c = w_c.astype(compute_dtype)
    b_phi = b_phi.astype(jnp.float32).reshape(1, H1)
    b_rho = b_rho.astype(jnp.float32).reshape(1, H2)
    b_c = b_c.astype(jnp.float32).reshape(1, C)

    n_tiles = M // tile_m

    out_shape = (
        jax.ShapeDtypeStruct((B, 2 * C + 1), jnp.float32),   # hazards | S | risks
        jax.ShapeDtypeStruct((B, 1), jnp.int32),             # y_hat
    )

    weight_specs = [
        pl.BlockSpec((D_in, H1), lambda m: (0, 0)),
        pl.BlockSpec((1, H1), lambda m: (0, 0)),
        pl.BlockSpec((H1, H2), lambda m: (0, 0)),
        pl.BlockSpec((1, H2), lambda m: (0, 0)),
        pl.BlockSpec((H2, C), lambda m: (0, 0)),
        pl.BlockSpec((1, C), lambda m: (0, 0)),
    ]
    out_specs = [
        pl.BlockSpec((B, 2 * C + 1), lambda m: (0, 0)),
        pl.BlockSpec((B, 1), lambda m: (0, 0)),
    ]

    if n_tiles == 1:
        kernel = _mil_sum_kernel_single
        scratch_shapes = []
    else:
        kernel = _mil_sum_kernel_tiled
        scratch_shapes = [pltpu.VMEM((B, H1), jnp.float32)]

    itemsize = jnp.dtype(compute_dtype).itemsize
    cost = pl.CostEstimate(
        flops=2 * B * M * D_in * H1 + 2 * B * H1 * H2 + 2 * B * H2 * C,
        transcendentals=B * C,
        bytes_accessed=(B * M * D_in + D_in * H1 + H1 * H2 + H2 * C) * itemsize
                       + (H1 + H2 + C) * 4 + (B * (2 * C + 1) + B) * 4,
    )

    grid_spec = pltpu.PrefetchScalarGridSpec(
        num_scalar_prefetch=0,
        grid=(n_tiles,),
        in_specs=[pl.BlockSpec((B, tile_m, D_in), lambda m: (0, m, 0))] + weight_specs,
        out_specs=out_specs,
        scratch_shapes=scratch_shapes,
    )

    fused, yhat = pl.pallas_call(
        kernel,
        out_shape=out_shape,
        grid_spec=grid_spec,
        compiler_params=pltpu.CompilerParams(
            dimension_semantics=("arbitrary",),        # instance axis is a reduction
            vmem_limit_bytes=vmem_limit_bytes),
        cost_estimate=cost,
    )(x_path, w_phi, b_phi, w_rho, b_rho, w_c, b_c)

    return {
        "hazards": fused[:, :C],
        "survival": fused[:, C:2 * C],
        "risks": fused[:, 2 * C],
        "y_hat": yhat,
    }


def mil_sum_fc_surv(x_path, w_phi, b_phi, w_rho, b_rho, w_c, b_c,
                    *, tile_m=None, compute_dtype=jnp.bfloat16):
    """MIL_Sum_FC_surv forward (fusion=None, eval mode). Returns hazards/survival/risks/y_hat."""
    B, M, D_in = x_path.shape
    H1 = w_phi.shape[1]
    H2 = w_rho.shape[1]
    C = w_c.shape[1]

    compute_dtype = jnp.dtype(compute_dtype)
    itemsize = compute_dtype.itemsize
    budget = _vmem_budget_bytes()
    fixed = _fixed_vmem_bytes(B, D_in, H1, H2, C, itemsize)

    if tile_m is None:
        tile_m = _choose_tile_m(B, M, D_in, itemsize, fixed, budget,
                                _sublane(compute_dtype))
    tile_m = int(tile_m)
    if M % tile_m != 0:
        raise ValueError("instance count must be divisible by tile_m")
    if tile_m != M and tile_m % 8 != 0:
        raise ValueError("partial instance tiles must be sublane-aligned (multiple of 8)")

    vmem_limit = fixed + 2 * B * tile_m * D_in * itemsize
    vmem_limit = int(min(max(vmem_limit, 16 * 1024 * 1024), budget))

    return _mil_sum_fc_surv_impl(x_path, w_phi, b_phi, w_rho, b_rho, w_c, b_c,
                                 tile_m=tile_m, compute_dtype=compute_dtype,
                                 vmem_limit_bytes=vmem_limit)


def _reference(x_path, w_phi, b_phi, w_rho, b_rho, w_c, b_c):
    h = jnp.maximum(jnp.einsum("bmd,dh->bmh", x_path, w_phi) + b_phi.reshape(1, -1), 0.0)
    h_path = h.sum(axis=1)
    h_path = jnp.maximum(h_path @ w_rho + b_rho.reshape(-1), 0.0)
    logits = h_path @ w_c + b_c.reshape(-1)
    hazards = jax.nn.sigmoid(logits)
    S = jnp.cumprod(1.0 - hazards, axis=1)
    risks = -jnp.sum(S, axis=1)
    y_hat = jnp.argmax(logits, axis=1).astype(jnp.int32)[:, None]
    return hazards, S, risks, y_hat


def _check(out, ref, rtol, atol, check_yhat):
    ref_haz, ref_S, ref_risks, ref_yhat = ref
    assert jnp.allclose(out["hazards"], ref_haz, rtol=rtol, atol=atol)
    assert jnp.allclose(out["survival"], ref_S, rtol=rtol, atol=atol)
    assert jnp.allclose(out["risks"], ref_risks, rtol=rtol, atol=atol)
    if check_yhat:
        assert jnp.array_equal(out["y_hat"], ref_yhat)
    else:
        C = ref_haz.shape[1]
        assert out["y_hat"].shape == ref_yhat.shape
        assert bool(jnp.all((out["y_hat"] >= 0) & (out["y_hat"] < C)))


if __name__ == "__main__":
    # Module-fixed sizes (size_arg='small'): 1024 -> 512 -> 256 -> n_classes=4.
    B, M, D_IN, H1, H2, C = 2, 16, 1024, 512, 256, 4

    key = jax.random.PRNGKey(0)
    ks = jax.random.split(key, 7)
    x_path = jax.random.normal(ks[0], (B, M, D_IN), dtype=jnp.float32)
    w_phi = jax.random.normal(ks[1], (D_IN, H1), dtype=jnp.float32) * 0.02
    b_phi = jax.random.normal(ks[2], (1, H1), dtype=jnp.float32) * 0.02
    w_rho = jax.random.normal(ks[3], (H1, H2), dtype=jnp.float32) * 0.02
    b_rho = jax.random.normal(ks[4], (1, H2), dtype=jnp.float32) * 0.02
    w_c = jax.random.normal(ks[5], (H2, C), dtype=jnp.float32) * 0.02
    b_c = jax.random.normal(ks[6], (1, C), dtype=jnp.float32) * 0.02

    ref = _reference(x_path, w_phi, b_phi, w_rho, b_rho, w_c, b_c)

    # 1) f32 compute: strict parity with PyTorch, single grid step (whole bag in VMEM).
    out = mil_sum_fc_surv(x_path, w_phi, b_phi, w_rho, b_rho, w_c, b_c,
                          compute_dtype=jnp.float32)
    jax.block_until_ready(out)
    _check(out, ref, 1e-5, 1e-5, check_yhat=True)

    # 2) f32 compute, forced tiled instance-reduction path (accumulator kernel).
    out_t = mil_sum_fc_surv(x_path, w_phi, b_phi, w_rho, b_rho, w_c, b_c,
                            tile_m=8, compute_dtype=jnp.float32)
    jax.block_until_ready(out_t)
    _check(out_t, ref, 1e-5, 1e-5, check_yhat=True)

    # 3) Default bf16 compute (recommended on TPU): loose parity; logits are tiny with
    #    random weights so y_hat ties are only checked for validity, not equality.
    out_bf = mil_sum_fc_surv(x_path, w_phi, b_phi, w_rho, b_rho, w_c, b_c)
    jax.block_until_ready(out_bf)
    _check(out_bf, ref, 3e-2, 3e-2, check_yhat=False)

    # 4) Unaligned instance count: exercises the einsum (no-relayout) phi path, f32 parity.
    x12 = x_path[:, :12, :]
    ref12 = _reference(x12, w_phi, b_phi, w_rho, b_rho, w_c, b_c)
    out12 = mil_sum_fc_surv(x12, w_phi, b_phi, w_rho, b_rho, w_c, b_c,
                            compute_dtype=jnp.float32)
    jax.block_until_ready(out12)
    _check(out12, ref12, 1e-5, 1e-5, check_yhat=True)

    print("KERNEL_OK")
</pallas_src>

<mosaic_0001>
module attributes {stable_mosaic.version = 11 : i64} {
  func.func @_mil_sum_kernel_single(%arg0: i32, %arg1: memref<2x16x1024xf32, #tpu.memory_space<vmem>>, %arg2: memref<1024x512xf32, #tpu.memory_space<vmem>>, %arg3: memref<1x512xf32, #tpu.memory_space<vmem>>, %arg4: memref<512x256xf32, #tpu.memory_space<vmem>>, %arg5: memref<1x256xf32, #tpu.memory_space<vmem>>, %arg6: memref<256x4xf32, #tpu.memory_space<vmem>>, %arg7: memref<1x4xf32, #tpu.memory_space<vmem>>, %arg8: memref<2x9xf32, #tpu.memory_space<vmem>>, %arg9: memref<2x1xi32, #tpu.memory_space<vmem>>) attributes {dimension_semantics = [#tpu.dimension_semantics<arbitrary>], iteration_bounds = array<i64: 1>, scalar_prefetch = 0 : i64, scratch_operands = 0 : i64, tpu.core_type = #tpu.core_type<tc>, window_params = [{transform_indices = @transform_0, window_bounds = array<i64: 2, 16, 1024>}, {pipeline_mode = #tpu.pipeline_mode<synchronous>, transform_indices = @transform_1, window_bounds = array<i64: 1024, 512>}, {pipeline_mode = #tpu.pipeline_mode<synchronous>, transform_indices = @transform_2, window_bounds = array<i64: 1, 512>}, {pipeline_mode = #tpu.pipeline_mode<synchronous>, transform_indices = @transform_3, window_bounds = array<i64: 512, 256>}, {pipeline_mode = #tpu.pipeline_mode<synchronous>, transform_indices = @transform_4, window_bounds = array<i64: 1, 256>}, {pipeline_mode = #tpu.pipeline_mode<synchronous>, transform_indices = @transform_5, window_bounds = array<i64: 256, 4>}, {pipeline_mode = #tpu.pipeline_mode<synchronous>, transform_indices = @transform_6, window_bounds = array<i64: 1, 4>}, {pipeline_mode = #tpu.pipeline_mode<synchronous>, transform_indices = @transform_7, window_bounds = array<i64: 2, 9>}, {pipeline_mode = #tpu.pipeline_mode<synchronous>, transform_indices = @transform_8, window_bounds = array<i64: 2, 1>}]} {
    %c0 = arith.constant 0 : index
    %c0_0 = arith.constant 0 : index
    %c0_1 = arith.constant 0 : index
    %0 = vector.load %arg1[%c0, %c0_0, %c0_1] : memref<2x16x1024xf32, #tpu.memory_space<vmem>>, vector<2x16x1024xf32>
    %1 = vector.shape_cast %0 : vector<2x16x1024xf32> to vector<32x1024xf32>
    %c0_2 = arith.constant 0 : index
    %c0_3 = arith.constant 0 : index
    %2 = vector.load %arg2[%c0_2, %c0_3] : memref<1024x512xf32, #tpu.memory_space<vmem>>, vector<1024x512xf32>
    %cst = arith.constant dense<0.000000e+00> : vector<32x512xf32>
    %3 = tpu.matmul %1, %2, %cst {dimension_numbers = #tpu.dot_dimension_numbers<[1], [0], [0], [1], [0, 0, 1, 1], [], []>} : vector<32x1024xf32>, vector<1024x512xf32>, vector<32x512xf32> -> vector<32x512xf32>
    %c0_4 = arith.constant 0 : index
    %c0_5 = arith.constant 0 : index
    %4 = vector.load %arg3[%c0_4, %c0_5] : memref<1x512xf32, #tpu.memory_space<vmem>>, vector<1x512xf32>
    %5 = vector.broadcast %4 : vector<1x512xf32> to vector<32x512xf32>
    %6 = arith.addf %3, %5 : vector<32x512xf32>
    %cst_6 = arith.constant 0.000000e+00 : f32
    %7 = vector.broadcast %cst_6 : f32 to vector<32x512xf32>
    %8 = arith.maximumf %6, %7 : vector<32x512xf32>
    %9 = vector.shape_cast %8 : vector<32x512xf32> to vector<2x16x512xf32>
    %cst_7 = arith.constant dense<0.000000e+00> : vector<2x512xf32>
    %10 = vector.multi_reduction <add>, %9, %cst_7 [1] : vector<2x16x512xf32> to vector<2x512xf32>
    %c0_8 = arith.constant 0 : index
    %c0_9 = arith.constant 0 : index
    %11 = vector.load %arg4[%c0_8, %c0_9] : memref<512x256xf32, #tpu.memory_space<vmem>>, vector<512x256xf32>
    %cst_10 = arith.constant dense<0.000000e+00> : vector<2x256xf32>
    %12 = tpu.matmul %10, %11, %cst_10 {dimension_numbers = #tpu.dot_dimension_numbers<[1], [0], [0], [1], [0, 0, 1, 1], [], []>} : vector<2x512xf32>, vector<512x256xf32>, vector<2x256xf32> -> vector<2x256xf32>
    %c0_11 = arith.constant 0 : index
    %c0_12 = arith.constant 0 : index
    %13 = vector.load %arg5[%c0_11, %c0_12] : memref<1x256xf32, #tpu.memory_space<vmem>>, vector<1x256xf32>
    %14 = vector.broadcast %13 : vector<1x256xf32> to vector<2x256xf32>
    %15 = arith.addf %12, %14 : vector<2x256xf32>
    %cst_13 = arith.constant 0.000000e+00 : f32
    %16 = vector.broadcast %cst_13 : f32 to vector<2x256xf32>
    %17 = arith.maximumf %15, %16 : vector<2x256xf32>
    %c0_14 = arith.constant 0 : index
    %c0_15 = arith.constant 0 : index
    %18 = vector.load %arg6[%c0_14, %c0_15] : memref<256x4xf32, #tpu.memory_space<vmem>>, vector<256x4xf32>
    %cst_16 = arith.constant dense<0.000000e+00> : vector<2x4xf32>
    %19 = tpu.matmul %17, %18, %cst_16 {dimension_numbers = #tpu.dot_dimension_numbers<[1], [0], [0], [1], [0, 0, 1, 1], [], []>} : vector<2x256xf32>, vector<256x4xf32>, vector<2x4xf32> -> vector<2x4xf32>
    %c0_17 = arith.constant 0 : index
    %c0_18 = arith.constant 0 : index
    %20 = vector.load %arg7[%c0_17, %c0_18] : memref<1x4xf32, #tpu.memory_space<vmem>>, vector<1x4xf32>
    %21 = vector.broadcast %20 : vector<1x4xf32> to vector<2x4xf32>
    %22 = arith.addf %19, %21 : vector<2x4xf32>
    %23 = arith.negf %22 : vector<2x4xf32>
    %24 = math.exp %23 : vector<2x4xf32>
    %cst_19 = arith.constant 1.000000e+00 : f32
    %25 = vector.broadcast %cst_19 : f32 to vector<2x4xf32>
    %26 = arith.addf %25, %24 : vector<2x4xf32>
    %27 = arith.divf %25, %26 : vector<2x4xf32>
    %cst_20 = arith.constant 1.000000e+00 : f32
    %28 = vector.broadcast %cst_20 : f32 to vector<2x4xf32>
    %29 = arith.subf %28, %27 : vector<2x4xf32>
    %30 = vector.extract_strided_slice %29 {offsets = [0, 0], sizes = [2, 1], strides = [1, 1]} : vector<2x4xf32> to vector<2x1xf32>
    %31 = vector.extract_strided_slice %29 {offsets = [0, 1], sizes = [2, 1], strides = [1, 1]} : vector<2x4xf32> to vector<2x1xf32>
    %32 = arith.mulf %30, %31 : vector<2x1xf32>
    %33 = vector.extract_strided_slice %29 {offsets = [0, 2], sizes = [2, 1], strides = [1, 1]} : vector<2x4xf32> to vector<2x1xf32>
    %34 = arith.mulf %32, %33 : vector<2x1xf32>
    %35 = vector.extract_strided_slice %29 {offsets = [0, 3], sizes = [2, 1], strides = [1, 1]} : vector<2x4xf32> to vector<2x1xf32>
    %36 = arith.mulf %34, %35 : vector<2x1xf32>
    %37 = tpu.concatenate %30, %32, %34, %36 in 1 : vector<2x1xf32>, vector<2x1xf32>, vector<2x1xf32>, vector<2x1xf32> -> vector<2x4xf32>
    %cst_21 = arith.constant dense<0.000000e+00> : vector<2xf32>
    %38 = vector.multi_reduction <add>, %37, %cst_21 [1] : vector<2x4xf32> to vector<2xf32>
    %39 = vector.shape_cast %38 : vector<2xf32> to vector<2x1xf32>
    %cst_22 = arith.constant 0.000000e+00 : f32
    %40 = vector.broadcast %cst_22 : f32 to vector<2x1xf32>
    %41 = arith.subf %40, %39 : vector<2x1xf32>
    %42 = tpu.concatenate %27, %37, %41 in 1 : vector<2x4xf32>, vector<2x4xf32>, vector<2x1xf32> -> vector<2x9xf32>
    %c0_23 = arith.constant 0 : index
    %c0_24 = arith.constant 0 : index
    %43 = vector.load %arg8[%c0_23, %c0_24] : memref<2x9xf32, #tpu.memory_space<vmem>>, vector<2x9xf32>
    tpu.vector_store %arg8[%c0_23, %c0_24], %42 {strides = array<i32>} : memref<2x9xf32, #tpu.memory_space<vmem>>, vector<2x9xf32>,
    %44 = tpu.iota {dimensions = array<i32: 1>} : vector<2x4xi32>
    %cst_25 = arith.constant dense<0xFF800000> : vector<2xf32>
    %45 = vector.multi_reduction <maximumf>, %22, %cst_25 [1] : vector<2x4xf32> to vector<2xf32>
    %46 = vector.shape_cast %45 : vector<2xf32> to vector<2x1xf32>
    %47 = vector.broadcast %46 : vector<2x1xf32> to vector<2x4xf32>
    %48 = arith.cmpf oeq, %22, %47 : vector<2x4xf32>
    %c4_i32 = arith.constant 4 : i32
    %49 = vector.broadcast %c4_i32 : i32 to vector<2x4xi32>
    %50 = arith.select %48, %44, %49 : vector<2x4xi1>, vector<2x4xi32>
    %cst_26 = arith.constant dense<2147483647> : vector<2xi32>
    %51 = vector.multi_reduction <minsi>, %50, %cst_26 [1] : vector<2x4xi32> to vector<2xi32>
    %52 = vector.shape_cast %51 : vector<2xi32> to vector<2x1xi32>
    %c0_27 = arith.constant 0 : index
    %c0_28 = arith.constant 0 : index
    %53 = vector.load %arg9[%c0_27, %c0_28] : memref<2x1xi32, #tpu.memory_space<vmem>>, vector<2x1xi32>
    tpu.vector_store %arg9[%c0_27, %c0_28], %52 {strides = array<i32>} : memref<2x1xi32, #tpu.memory_space<vmem>>, vector<2x1xi32>,
    return
  }
  func.func @transform_0(%arg0: i32) -> (i32, i32, i32) {
    %c0_i32 = arith.constant 0 : i32
    %c0_i32_0 = arith.constant 0 : i32
    %c0_i32_1 = arith.constant 0 : i32
    return %c0_i32, %arg0, %c0_i32_0 : i32, i32, i32
  }
  func.func @transform_1(%arg0: i32) -> (i32, i32) {
    %c0_i32 = arith.constant 0 : i32
    %c0_i32_0 = arith.constant 0 : i32
    %c0_i32_1 = arith.constant 0 : i32
    return %c0_i32, %c0_i32_0 : i32, i32
  }
  func.func @transform_2(%arg0: i32) -> (i32, i32) {
    %c0_i32 = arith.constant 0 : i32
    %c0_i32_0 = arith.constant 0 : i32
    %c0_i32_1 = arith.constant 0 : i32
    return %c0_i32, %c0_i32_0 : i32, i32
  }
  func.func @transform_3(%arg0: i32) -> (i32, i32) {
    %c0_i32 = arith.constant 0 : i32
    %c0_i32_0 = arith.constant 0 : i32
    %c0_i32_1 = arith.constant 0 : i32
    return %c0_i32, %c0_i32_0 : i32, i32
  }
  func.func @transform_4(%arg0: i32) -> (i32, i32) {
    %c0_i32 = arith.constant 0 : i32
    %c0_i32_0 = arith.constant 0 : i32
    %c0_i32_1 = arith.constant 0 : i32
    return %c0_i32, %c0_i32_0 : i32, i32
  }
  func.func @transform_5(%arg0: i32) -> (i32, i32) {
    %c0_i32 = arith.constant 0 : i32
    %c0_i32_0 = arith.constant 0 : i32
    %c0_i32_1 = arith.constant 0 : i32
    return %c0_i32, %c0_i32_0 : i32, i32
  }
  func.func @transform_6(%arg0: i32) -> (i32, i32) {
    %c0_i32 = arith.constant 0 : i32
    %c0_i32_0 = arith.constant 0 : i32
    %c0_i32_1 = arith.constant 0 : i32
    return %c0_i32, %c0_i32_0 : i32, i32
  }
  func.func @transform_7(%arg0: i32) -> (i32, i32) {
    %c0_i32 = arith.constant 0 : i32
    %c0_i32_0 = arith.constant 0 : i32
    %c0_i32_1 = arith.constant 0 : i32
    return %c0_i32, %c0_i32_0 : i32, i32
  }
  func.func @transform_8(%arg0: i32) -> (i32, i32) {
    %c0_i32 = arith.constant 0 : i32
    %c0_i32_0 = arith.constant 0 : i32
    %c0_i32_1 = arith.constant 0 : i32
    return %c0_i32, %c0_i32_0 : i32, i32
  }
}

</mosaic_0001>

<llo_original>
// kernel: _mil_sum_fc_surv_impl.1
$region0: #{_mil_sum_fc_surv_impl.1}
  #allocation0 [shape = 'u32[]', space=smem, size = 0x4, offset = 0x4, fixed_abs, tag = 'smem constant byte address 0x4 - core index']
  #allocation1 [shape = 'u32[72,128]{1,0:T(1,128)}', space=vmem, size = 0x9000, scoped, tag = 'internal scratch']
  %s0 = inlined_call_operand.hbm [shape: f32[2,16,1024], index: 0, kind: input, shape index: {}]
  %s1 = inlined_call_operand.hbm [shape: f32[1024,512], index: 1, kind: input, shape index: {}]
  %s2 = inlined_call_operand.hbm [shape: f32[1,512], index: 2, kind: input, shape index: {}]
  %s3 = inlined_call_operand.hbm [shape: f32[512,256], index: 3, kind: input, shape index: {}]
  %s4 = inlined_call_operand.hbm [shape: f32[1,256], index: 4, kind: input, shape index: {}]
  %s5 = inlined_call_operand.vmem [shape: f32[256,4], index: 5, kind: input, shape index: {}]
  %s6 = inlined_call_operand.hbm [shape: f32[1,4], index: 6, kind: input, shape index: {}]
  %s7 = inlined_call_operand.vmem [shape: f32[2,9], index: 7, kind: output, shape index: {0}]
  %s8 = inlined_call_operand.vmem [shape: s32[2,1], index: 8, kind: output, shape index: {1}]
  %9 = xla_tuple %s7, %s8
  %s10 = sld [smem:[#allocation0]]
  $region70: #{_mil_sum_fc_surv_impl.1} parent=0
    _
  %s12 = ssub.s32 1, %s10
  %s13 = scalar_select 0, %s12, %s10
  $region1: #{_mil_sum_fc_surv_impl.1} parent=0
    #allocation2 [shape = 'u8[131072]{0}', space=vmem, size = 0x20000, scoped, tag = 'input window, operand 0, single buffered']
    #allocation3 [shape = 's32[1]{0}', space=sflag, size = 0x4, scoped, tag = 'scoped memory for _mil_sum_fc_surv_impl.1']
    #allocation4 [shape = 'u8[2097152]{0}', space=vmem, size = 0x200000, scoped, tag = 'input window, operand 1, single buffered']
    #allocation5 [shape = 's32[1]{0}', space=sflag, size = 0x4, scoped, tag = 'scoped memory for _mil_sum_fc_surv_impl.1']
    #allocation6 [shape = 'u8[2048]{0}', space=vmem, size = 0x800, scoped, tag = 'input window, operand 2, single buffered']
    #allocation7 [shape = 'u8[524288]{0}', space=vmem, size = 0x80000, scoped, tag = 'input window, operand 3, single buffered']
    #allocation8 [shape = 's32[1]{0}', space=sflag, size = 0x4, scoped, tag = 'scoped memory for _mil_sum_fc_surv_impl.1']
    #allocation9 [shape = 'u8[1024]{0}', space=vmem, size = 0x400, scoped, tag = 'input window, operand 4, single buffered']
    #allocation10 [shape = 'u8[512]{0}', space=vmem, size = 0x400, scoped, tag = 'input window, operand 6, single buffered']
    #allocation11 [shape = 's32[1]{0}', space=sflag, size = 0x4, scoped, tag = 'scoped memory for _mil_sum_fc_surv_impl.1']
    %14 = vsyncpa [#allocation3], 0
    %15 = vsyncpa [#allocation5], 0
    %16 = vsyncpa [#allocation8], 0
    %17 = vsyncpa [#allocation11], 0
    // Predicated region
    $region2: #{_mil_sum_fc_surv_impl.1} parent=1 // pred_check
      _
    $region3: #{_mil_sum_fc_surv_impl.1} parent=1 // pred_check_branch
      %19 = sbr.rel (0) target = $region5
    $region4: #{_mil_sum_fc_surv_impl.1} parent=1 // pred_region
      %21 = vsyncadd [#allocation3], 0
      %s22 = sshll.u32 %s0, 4
      %s23 = int_to_ptr.hbm [resolvable:$true] %s22
      %s24 = sshll.u32 [#allocation2], 4
      %s25 = int_to_ptr.vmem [resolvable:$true] %s24
      %30 = dma.hbm_to_vmem [thread:$0]  %s23, 4096, %s25, [#allocation3], 1024, 1024, 64
    $region5: #{_mil_sum_fc_surv_impl.1} parent=1 // pred_fallthru
      _
    // Predicated region
    $region6: #{_mil_sum_fc_surv_impl.1} parent=1 // pred_check
      _
    $region7: #{_mil_sum_fc_surv_impl.1} parent=1 // pred_check_branch
      %32 = sbr.rel (0) target = $region9
    $region8: #{_mil_sum_fc_surv_impl.1} parent=1 // pred_region
      %34 = vsyncadd [#allocation5], 0
      %s35 = sshll.u32 %s1, 4
      %s36 = int_to_ptr.hbm [resolvable:$true] %s35
      %s37 = sshll.u32 [#allocation4], 4
      %s38 = int_to_ptr.vmem [resolvable:$true] %s37
      %43 = dma.hbm_to_vmem [thread:$0]  %s36, 65536, %s38, [#allocation5], 512, 512, 32
    $region9: #{_mil_sum_fc_surv_impl.1} parent=1 // pred_fallthru
      _
    // Predicated region
    $region10: #{_mil_sum_fc_surv_impl.1} parent=1 // pred_check
      _
    $region11: #{_mil_sum_fc_surv_impl.1} parent=1 // pred_check_branch
      %45 = sbr.rel (0) target = $region13
    $region12: #{_mil_sum_fc_surv_impl.1} parent=1 // pred_region
      %47 = vsyncadd [#allocation5], 0
      %s49 = sshll.u32 %s2, 4
      %s50 = int_to_ptr.hbm [resolvable:$true] %s49
      %s51 = sshll.u32 [#allocation6], 4
      %s52 = int_to_ptr.vmem [resolvable:$true] %s51
      %54 = dma.hbm_to_vmem [thread:$0]  %s50, 64, %s52, [#allocation5]
    $region13: #{_mil_sum_fc_surv_impl.1} parent=1 // pred_fallthru
      _
    // Predicated region
    $region14: #{_mil_sum_fc_surv_impl.1} parent=1 // pred_check
      _
    $region15: #{_mil_sum_fc_surv_impl.1} parent=1 // pred_check_branch
      %56 = sbr.rel (0) target = $region17
    $region16: #{_mil_sum_fc_surv_impl.1} parent=1 // pred_region
      %58 = vsyncadd [#allocation8], 0
      %s59 = sshll.u32 %s3, 4
      %s60 = int_to_ptr.hbm [resolvable:$true] %s59
      %s61 = sshll.u32 [#allocation7], 4
      %s62 = int_to_ptr.vmem [resolvable:$true] %s61
      %67 = dma.hbm_to_vmem [thread:$0]  %s60, 16384, %s62, [#allocation8], 256, 256, 16
    $region17: #{_mil_sum_fc_surv_impl.1} parent=1 // pred_fallthru
      _
    // Predicated region
    $region18: #{_mil_sum_fc_surv_impl.1} parent=1 // pred_check
      _
    $region19: #{_mil_sum_fc_surv_impl.1} parent=1 // pred_check_branch
      %69 = sbr.rel (0) target = $region21
    $region20: #{_mil_sum_fc_surv_impl.1} parent=1 // pred_region
      %71 = vsyncadd [#allocation8], 0
      %s73 = sshll.u32 %s4, 4
      %s74 = int_to_ptr.hbm [resolvable:$true] %s73
      %s75 = sshll.u32 [#allocation9], 4
      %s76 = int_to_ptr.vmem [resolvable:$true] %s75
      %78 = dma.hbm_to_vmem [thread:$0]  %s74, 32, %s76, [#allocation8]
    $region21: #{_mil_sum_fc_surv_impl.1} parent=1 // pred_fallthru
      _
    // Predicated region
    $region22: #{_mil_sum_fc_surv_impl.1} parent=1 // pred_check
      _
    $region23: #{_mil_sum_fc_surv_impl.1} parent=1 // pred_check_branch
      %80 = sbr.rel (0) target = $region25
    $region24: #{_mil_sum_fc_surv_impl.1} parent=1 // pred_region
      _
    $region25: #{_mil_sum_fc_surv_impl.1} parent=1 // pred_fallthru
      _
    // Predicated region
    $region26: #{_mil_sum_fc_surv_impl.1} parent=1 // pred_check
      _
    $region27: #{_mil_sum_fc_surv_impl.1} parent=1 // pred_check_branch
      %82 = sbr.rel (0) target = $region29
    $region28: #{_mil_sum_fc_surv_impl.1} parent=1 // pred_region
      %84 = vsyncadd [#allocation11], 0
      %s86 = sshll.u32 %s6, 4
      %s87 = int_to_ptr.hbm [resolvable:$true] %s86
      %s88 = sshll.u32 [#allocation10], 4
      %s89 = int_to_ptr.vmem [resolvable:$true] %s88
      %91 = dma.hbm_to_vmem [thread:$0]  %s87, 16, %s89, [#allocation11]
    $region29: #{_mil_sum_fc_surv_impl.1} parent=1 // pred_fallthru
      _
    // Predicated region
    $region30: #{_mil_sum_fc_surv_impl.1} parent=1 // pred_check
      _
    $region31: #{_mil_sum_fc_surv_impl.1} parent=1 // pred_check_branch
      %93 = sbr.rel (0) target = $region33
    $region32: #{_mil_sum_fc_surv_impl.1} parent=1 // pred_region
      %95 = dma.done [#allocation3], 4096
    $region33: #{_mil_sum_fc_surv_impl.1} parent=1 // pred_fallthru
      _
    // Predicated region
    $region34: #{_mil_sum_fc_surv_impl.1} parent=1 // pred_check
      _
    $region35: #{_mil_sum_fc_surv_impl.1} parent=1 // pred_check_branch
      %97 = sbr.rel (0) target = $region37
    $region36: #{_mil_sum_fc_surv_impl.1} parent=1 // pred_region
      %99 = dma.done [#allocation5], 65536
    $region37: #{_mil_sum_fc_surv_impl.1} parent=1 // pred_fallthru
      _
    // Predicated region
    $region38: #{_mil_sum_fc_surv_impl.1} parent=1 // pred_check
      _
    $region39: #{_mil_sum_fc_surv_impl.1} parent=1 // pred_check_branch
      %101 = sbr.rel (0) target = $region41
    $region40: #{_mil_sum_fc_surv_impl.1} parent=1 // pred_region
      %103 = dma.done [#allocation5], 64
    $region41: #{_mil_sum_fc_surv_impl.1} parent=1 // pred_fallthru
      _
    // Predicated region
    $region42: #{_mil_sum_fc_surv_impl.1} parent=1 // pred_check
      _
    $region43: #{_mil_sum_fc_surv_impl.1} parent=1 // pred_check_branch
      %105 = sbr.rel (0) target = $region45
    $region44: #{_mil_sum_fc_surv_impl.1} parent=1 // pred_region
      %107 = dma.done [#allocation8], 16384
    $region45: #{_mil_sum_fc_surv_impl.1} parent=1 // pred_fallthru
      _
    // Predicated region
    $region46: #{_mil_sum_fc_surv_impl.1} parent=1 // pred_check
      _
    $region47: #{_mil_sum_fc_surv_impl.1} parent=1 // pred_check_branch
      %109 = sbr.rel (0) target = $region49
    $region48: #{_mil_sum_fc_surv_impl.1} parent=1 // pred_region
      %111 = dma.done [#allocation8], 32
    $region49: #{_mil_sum_fc_surv_impl.1} parent=1 // pred_fallthru
      _
    // Predicated region
    $region50: #{_mil_sum_fc_surv_impl.1} parent=1 // pred_check
      _
    $region51: #{_mil_sum_fc_surv_impl.1} parent=1 // pred_check_branch
      %113 = sbr.rel (0) target = $region53
    $region52: #{_mil_sum_fc_surv_impl.1} parent=1 // pred_region
      %115 = dma.done [#allocation11], 16
    $region53: #{_mil_sum_fc_surv_impl.1} parent=1 // pred_fallthru
      _
    %v116 = vld [vmem:[#allocation2] sm:$0xff]
    %v117 = vld [vmem:[#allocation2 + $0x8] sm:$0xff]
    %v118 = vld [vmem:[#allocation2 + $0x10] sm:$0xff]
    %v119 = vld [vmem:[#allocation2 + $0x18] sm:$0xff]
    %v120 = vld [vmem:[#allocation2 + $0x20] sm:$0xff]
    %v121 = vld [vmem:[#allocation2 + $0x28] sm:$0xff]
    %v122 = vld [vmem:[#allocation2 + $0x30] sm:$0xff]
    %v123 = vld [vmem:[#allocation2 + $0x38] sm:$0xff]
    %v124 = vld [vmem:[#allocation2 + $0x40] sm:$0xff]
    %v125 = vld [vmem:[#allocation2 + $0x48] sm:$0xff]
    %v126 = vld [vmem:[#allocation2 + $0x50] sm:$0xff]
    %v127 = vld [vmem:[#allocation2 + $0x58] sm:$0xff]
    %v128 = vld [vmem:[#allocation2 + $0x60] sm:$0xff]
    %v129 = vld [vmem:[#allocation2 + $0x68] sm:$0xff]
    %v130 = vld [vmem:[#allocation2 + $0x70] sm:$0xff]
    %v131 = vld [vmem:[#allocation2 + $0x78] sm:$0xff]
    %v132 = vld [vmem:[#allocation2 + $0x80] sm:$0xff]
    %v133 = vld [vmem:[#allocation2 + $0x88] sm:$0xff]
    %v134 = vld [vmem:[#allocation2 + $0x90] sm:$0xff]
    %v135 = vld [vmem:[#allocation2 + $0x98] sm:$0xff]
    %v136 = vld [vmem:[#allocation2 + $0xa0] sm:$0xff]
    %v137 = vld [vmem:[#allocation2 + $0xa8] sm:$0xff]
    %v138 = vld [vmem:[#allocation2 + $0xb0] sm:$0xff]
    %v139 = vld [vmem:[#allocation2 + $0xb8] sm:$0xff]
    %v140 = vld [vmem:[#allocation2 + $0xc0] sm:$0xff]
    %v141 = vld [vmem:[#allocation2 + $0xc8] sm:$0xff]
    %v142 = vld [vmem:[#allocation2 + $0xd0] sm:$0xff]
    %v143 = vld [vmem:[#allocation2 + $0xd8] sm:$0xff]
    %v144 = vld [vmem:[#allocation2 + $0xe0] sm:$0xff]
    %v145 = vld [vmem:[#allocation2 + $0xe8] sm:$0xff]
    %v146 = vld [vmem:[#allocation2 + $0xf0] sm:$0xff]
    %v147 = vld [vmem:[#allocation2 + $0xf8] sm:$0xff]
    %v148 = vld [vmem:[#allocation4] sm:$0xff]
    %v149 = vld [vmem:[#allocation4 + $0x8] sm:$0xff]
    %v150 = vld [vmem:[#allocation4 + $0x10] sm:$0xff]
    %v151 = vld [vmem:[#allocation4 + $0x18] sm:$0xff]
    %v152 = vld [vmem:[#allocation4 + $0x20] sm:$0xff]
    %v153 = vld [vmem:[#allocation4 + $0x28] sm:$0xff]
    %v154 = vld [vmem:[#allocation4 + $0x30] sm:$0xff]
    %v155 = vld [vmem:[#allocation4 + $0x38] sm:$0xff]
    %v156 = vld [vmem:[#allocation4 + $0x40] sm:$0xff]
    %v157 = vld [vmem:[#allocation4 + $0x48] sm:$0xff]
    %v158 = vld [vmem:[#allocation4 + $0x50] sm:$0xff]
    %v159 = vld [vmem:[#allocation4 + $0x58] sm:$0xff]
    %v160 = vld [vmem:[#allocation4 + $0x60] sm:$0xff]
    %v161 = vld [vmem:[#allocation4 + $0x68] sm:$0xff]
    %v162 = vld [vmem:[#allocation4 + $0x70] sm:$0xff]
    %v163 = vld [vmem:[#allocation4 + $0x78] sm:$0xff]
    %v164 = vld [vmem:[#allocation4 + $0x80] sm:$0xff]
    %v165 = vld [vmem:[#allocation4 + $0x88] sm:$0xff]
    %v166 = vld [vmem:[#allocation4 + $0x90] sm:$0xff]
    %v167 = vld [vmem:[#allocation4 + $0x98] sm:$0xff]
    %v168 = vld [vmem:[#allocation4 + $0xa0] sm:$0xff]
    %v169 = vld [vmem:[#allocation4 + $0xa8] sm:$0xff]
    %v170 = vld [vmem:[#allocation4 + $0xb0] sm:$0xff]
    %v171 = vld [vmem:[#allocation4 + $0xb8] sm:$0xff]
    %v172 = vld [vmem:[#allocation4 + $0xc0] sm:$0xff]
    %v173 = vld [vmem:[#allocation4 + $0xc8] sm:$0xff]
    %v174 = vld [vmem:[#allocation4 + $0xd0] sm:$0xff]
    %v175 = vld [vmem:[#allocation4 + $0xd8] sm:$0xff]
    %v176 = vld [vmem:[#allocation4 + $0xe0] sm:$0xff]
    %v177 = vld [vmem:[#allocation4 + $0xe8] sm:$0xff]
    %v178 = vld [vmem:[#allocation4 + $0xf0] sm:$0xff]
    %v179 = vld [vmem:[#allocation4 + $0xf8] sm:$0xff]
    %v180 = vld [vmem:[#allocation4 + $0x100] sm:$0xff]
    %v181 = vld [vmem:[#allocation4 + $0x108] sm:$0xff]
    %v182 = vld [vmem:[#allocation4 + $0x110] sm:$0xff]
    %v183 = vld [vmem:[#allocation4 + $0x118] sm:$0xff]
    %v184 = vld [vmem:[#allocation4 + $0x120] sm:$0xff]
    %v185 = vld [vmem:[#allocation4 + $0x128] sm:$0xff]
    %v186 = vld [vmem:[#allocation4 + $0x130] sm:$0xff]
    %v187 = vld [vmem:[#allocation4 + $0x138] sm:$0xff]
    %v188 = vld [vmem:[#allocation4 + $0x140] sm:$0xff]
    %v189 = vld [vmem:[#allocation4 + $0x148] sm:$0xff]
    %v190 = vld [vmem:[#allocation4 + $0x150] sm:$0xff]
    %v191 = vld [vmem:[#allocation4 + $0x158] sm:$0xff]
    %v192 = vld [vmem:[#allocation4 + $0x160] sm:$0xff]
    %v193 = vld [vmem:[#allocation4 + $0x168] sm:$0xff]
    %v194 = vld [vmem:[#allocation4 + $0x170] sm:$0xff]
    %v195 = vld [vmem:[#allocation4 + $0x178] sm:$0xff]
    %v196 = vld [vmem:[#allocation4 + $0x180] sm:$0xff]
    %v197 = vld [vmem:[#allocation4 + $0x188] sm:$0xff]
    %v198 = vld [vmem:[#allocation4 + $0x190] sm:$0xff]
    %v199 = vld [vmem:[#allocation4 + $0x198] sm:$0xff]
    %v200 = vld [vmem:[#allocation4 + $0x1a0] sm:$0xff]
    %v201 = vld [vmem:[#allocation4 + $0x1a8] sm:$0xff]
    %v202 = vld [vmem:[#allocation4 + $0x1b0] sm:$0xff]
    %v203 = vld [vmem:[#allocation4 + $0x1b8] sm:$0xff]
    %v204 = vld [vmem:[#allocation4 + $0x1c0] sm:$0xff]
    %v205 = vld [vmem:[#allocation4 + $0x1c8] sm:$0xff]
    %v206 = vld [vmem:[#allocation4 + $0x1d0] sm:$0xff]
    %v207 = vld [vmem:[#allocation4 + $0x1d8] sm:$0xff]
    %v208 = vld [vmem:[#allocation4 + $0x1e0] sm:$0xff]
    %v209 = vld [vmem:[#allocation4 + $0x1e8] sm:$0xff]
    %v210 = vld [vmem:[#allocation4 + $0x1f0] sm:$0xff]
    %v211 = vld [vmem:[#allocation4 + $0x1f8] sm:$0xff]
    %v212 = vld [vmem:[#allocation4 + $0x200] sm:$0xff]
    %v213 = vld [vmem:[#allocation4 + $0x208] sm:$0xff]
    %v214 = vld [vmem:[#allocation4 + $0x210] sm:$0xff]
    %v215 = vld [vmem:[#allocation4 + $0x218] sm:$0xff]
    %v216 = vld [vmem:[#allocation4 + $0x220] sm:$0xff]
    %v217 = vld [vmem:[#allocation4 + $0x228] sm:$0xff]
    %v218 = vld [vmem:[#allocation4 + $0x230] sm:$0xff]
    %v219 = vld [vmem:[#allocation4 + $0x238] sm:$0xff]
    %v220 = vld [vmem:[#allocation4 + $0x240] sm:$0xff]
    %v221 = vld [vmem:[#allocation4 + $0x248] sm:$0xff]
    %v222 = vld [vmem:[#allocation4 + $0x250] sm:$0xff]
    %v223 = vld [vmem:[#allocation4 + $0x258] sm:$0xff]
    %v224 = vld [vmem:[#allocation4 + $0x260] sm:$0xff]
    %v225 = vld [vmem:[#allocation4 + $0x268] sm:$0xff]
    %v226 = vld [vmem:[#allocation4 + $0x270] sm:$0xff]
    %v227 = vld [vmem:[#allocation4 + $0x278] sm:$0xff]
    %v228 = vld [vmem:[#allocation4 + $0x280] sm:$0xff]
    %v229 = vld [vmem:[#allocation4 + $0x288] sm:$0xff]
    %v230 = vld [vmem:[#allocation4 + $0x290] sm:$0xff]
    %v231 = vld [vmem:[#allocation4 + $0x298] sm:$0xff]
    %v232 = vld [vmem:[#allocation4 + $0x2a0] sm:$0xff]
    %v233 = vld [vmem:[#allocation4 + $0x2a8] sm:$0xff]
    %v234 = vld [vmem:[#allocation4 + $0x2b0] sm:$0xff]
    %v235 = vld [vmem:[#allocation4 + $0x2b8] sm:$0xff]
    %v236 = vld [vmem:[#allocation4 + $0x2c0] sm:$0xff]
    %v237 = vld [vmem:[#allocation4 + $0x2c8] sm:$0xff]
    %v238 = vld [vmem:[#allocation4 + $0x2d0] sm:$0xff]
    %v239 = vld [vmem:[#allocation4 + $0x2d8] sm:$0xff]
    %v240 = vld [vmem:[#allocation4 + $0x2e0] sm:$0xff]
    %v241 = vld [vmem:[#allocation4 + $0x2e8] sm:$0xff]
    %v242 = vld [vmem:[#allocation4 + $0x2f0] sm:$0xff]
    %v243 = vld [vmem:[#allocation4 + $0x2f8] sm:$0xff]
    %v244 = vld [vmem:[#allocation4 + $0x300] sm:$0xff]
    %v245 = vld [vmem:[#allocation4 + $0x308] sm:$0xff]
    %v246 = vld [vmem:[#allocation4 + $0x310] sm:$0xff]
    %v247 = vld [vmem:[#allocation4 + $0x318] sm:$0xff]
    %v248 = vld [vmem:[#allocation4 + $0x320] sm:$0xff]
    %v249 = vld [vmem:[#allocation4 + $0x328] sm:$0xff]
    %v250 = vld [vmem:[#allocation4 + $0x330] sm:$0xff]
    %v251 = vld [vmem:[#allocation4 + $0x338] sm:$0xff]
    %v252 = vld [vmem:[#allocation4 + $0x340] sm:$0xff]
    %v253 = vld [vmem:[#allocation4 + $0x348] sm:$0xff]
    %v254 = vld [vmem:[#allocation4 + $0x350] sm:$0xff]
    %v255 = vld [vmem:[#allocation4 + $0x358] sm:$0xff]
    %v256 = vld [vmem:[#allocation4 + $0x360] sm:$0xff]
    %v257 = vld [vmem:[#allocation4 + $0x368] sm:$0xff]
    %v258 = vld [vmem:[#allocation4 + $0x370] sm:$0xff]
    %v259 = vld [vmem:[#allocation4 + $0x378] sm:$0xff]
    %v260 = vld [vmem:[#allocation4 + $0x380] sm:$0xff]
    %v261 = vld [vmem:[#allocation4 + $0x388] sm:$0xff]
    %v262 = vld [vmem:[#allocation4 + $0x390] sm:$0xff]
    %v263 = vld [vmem:[#allocation4 + $0x398] sm:$0xff]
    %v264 = vld [vmem:[#allocation4 + $0x3a0] sm:$0xff]
    %v265 = vld [vmem:[#allocation4 + $0x3a8] sm:$0xff]
    %v266 = vld [vmem:[#allocation4 + $0x3b0] sm:$0xff]
    %v267 = vld [vmem:[#allocation4 + $0x3b8] sm:$0xff]
    %v268 = vld [vmem:[#allocation4 + $0x3c0] sm:$0xff]
    %v269 = vld [vmem:[#allocation4 + $0x3c8] sm:$0xff]
    %v270 = vld [vmem:[#allocation4 + $0x3d0] sm:$0xff]
    %v271 = vld [vmem:[#allocation4 + $0x3d8] sm:$0xff]
    %v272 = vld [vmem:[#allocation4 + $0x3e0] sm:$0xff]
    %v273 = vld [vmem:[#allocation4 + $0x3e8] sm:$0xff]
    %v274 = vld [vmem:[#allocation4 + $0x3f0] sm:$0xff]
    %v275 = vld [vmem:[#allocation4 + $0x3f8] sm:$0xff]
    %v276 = vld [vmem:[#allocation4 + $0x400] sm:$0xff]
    %v277 = vld [vmem:[#allocation4 + $0x408] sm:$0xff]
    %v278 = vld [vmem:[#allocation4 + $0x410] sm:$0xff]
    %v279 = vld [vmem:[#allocation4 + $0x418] sm:$0xff]
    %v280 = vld [vmem:[#allocation4 + $0x420] sm:$0xff]
    %v281 = vld [vmem:[#allocation4 + $0x428] sm:$0xff]
    %v282 = vld [vmem:[#allocation4 + $0x430] sm:$0xff]
    %v283 = vld [vmem:[#allocation4 + $0x438] sm:$0xff]
    %v284 = vld [vmem:[#allocation4 + $0x440] sm:$0xff]
    %v285 = vld [vmem:[#allocation4 + $0x448] sm:$0xff]
    %v286 = vld [vmem:[#allocation4 + $0x450] sm:$0xff]
    %v287 = vld [vmem:[#allocation4 + $0x458] sm:$0xff]
    %v288 = vld [vmem:[#allocation4 + $0x460] sm:$0xff]
    %v289 = vld [vmem:[#allocation4 + $0x468] sm:$0xff]
    %v290 = vld [vmem:[#allocation4 + $0x470] sm:$0xff]
    %v291 = vld [vmem:[#allocation4 + $0x478] sm:$0xff]
    %v292 = vld [vmem:[#allocation4 + $0x480] sm:$0xff]
    %v293 = vld [vmem:[#allocation4 + $0x488] sm:$0xff]
    %v294 = vld [vmem:[#allocation4 + $0x490] sm:$0xff]
    %v295 = vld [vmem:[#allocation4 + $0x498] sm:$0xff]
    %v296 = vld [vmem:[#allocation4 + $0x4a0] sm:$0xff]
    %v297 = vld [vmem:[#allocation4 + $0x4a8] sm:$0xff]
    %v298 = vld [vmem:[#allocation4 + $0x4b0] sm:$0xff]
    %v299 = vld [vmem:[#allocation4 + $0x4b8] sm:$0xff]
    %v300 = vld [vmem:[#allocation4 + $0x4c0] sm:$0xff]
    %v301 = vld [vmem:[#allocation4 + $0x4c8] sm:$0xff]
    %v302 = vld [vmem:[#allocation4 + $0x4d0] sm:$0xff]
    %v303 = vld [vmem:[#allocation4 + $0x4d8] sm:$0xff]
    %v304 = vld [vmem:[#allocation4 + $0x4e0] sm:$0xff]
    %v305 = vld [vmem:[#allocation4 + $0x4e8] sm:$0xff]
    %v306 = vld [vmem:[#allocation4 + $0x4f0] sm:$0xff]
    %v307 = vld [vmem:[#allocation4 + $0x4f8] sm:$0xff]
    %v308 = vld [vmem:[#allocation4 + $0x500] sm:$0xff]
    %v309 = vld [vmem:[#allocation4 + $0x508] sm:$0xff]
    %v310 = vld [vmem:[#allocation4 + $0x510] sm:$0xff]
    %v311 = vld [vmem:[#allocation4 + $0x518] sm:$0xff]
    %v312 = vld [vmem:[#allocation4 + $0x520] sm:$0xff]
    %v313 = vld [vmem:[#allocation4 + $0x528] sm:$0xff]
    %v314 = vld [vmem:[#allocation4 + $0x530] sm:$0xff]
    %v315 = vld [vmem:[#allocation4 + $0x538] sm:$0xff]
    %v316 = vld [vmem:[#allocation4 + $0x540] sm:$0xff]
    %v317 = vld [vmem:[#allocation4 + $0x548] sm:$0xff]
    %v318 = vld [vmem:[#allocation4 + $0x550] sm:$0xff]
    %v319 = vld [vmem:[#allocation4 + $0x558] sm:$0xff]
    %v320 = vld [vmem:[#allocation4 + $0x560] sm:$0xff]
    %v321 = vld [vmem:[#allocation4 + $0x568] sm:$0xff]
    %v322 = vld [vmem:[#allocation4 + $0x570] sm:$0xff]
    %v323 = vld [vmem:[#allocation4 + $0x578] sm:$0xff]
    %v324 = vld [vmem:[#allocation4 + $0x580] sm:$0xff]
    %v325 = vld [vmem:[#allocation4 + $0x588] sm:$0xff]
    %v326 = vld [vmem:[#allocation4 + $0x590] sm:$0xff]
    %v327 = vld [vmem:[#allocation4 + $0x598] sm:$0xff]
    %v328 = vld [vmem:[#allocation4 + $0x5a0] sm:$0xff]
    %v329 = vld [vmem:[#allocation4 + $0x5a8] sm:$0xff]
    %v330 = vld [vmem:[#allocation4 + $0x5b0] sm:$0xff]
    %v331 = vld [vmem:[#allocation4 + $0x5b8] sm:$0xff]
    %v332 = vld [vmem:[#allocation4 + $0x5c0] sm:$0xff]
    %v333 = vld [vmem:[#allocation4 + $0x5c8] sm:$0xff]
    %v334 = vld [vmem:[#allocation4 + $0x5d0] sm:$0xff]
    %v335 = vld [vmem:[#allocation4 + $0x5d8] sm:$0xff]
    %v336 = vld [vmem:[#allocation4 + $0x5e0] sm:$0xff]
    %v337 = vld [vmem:[#allocation4 + $0x5e8] sm:$0xff]
    %v338 = vld [vmem:[#allocation4 + $0x5f0] sm:$0xff]
    %v339 = vld [vmem:[#allocation4 + $0x5f8] sm:$0xff]
    %v340 = vld [vmem:[#allocation4 + $0x600] sm:$0xff]
    %v341 = vld [vmem:[#allocation4 + $0x608] sm:$0xff]
    %v342 = vld [vmem:[#allocation4 + $0x610] sm:$0xff]
    %v343 = vld [vmem:[#allocation4 + $0x618] sm:$0xff]
    %v344 = vld [vmem:[#allocation4 + $0x620] sm:$0xff]
    %v345 = vld [vmem:[#allocation4 + $0x628] sm:$0xff]
    %v346 = vld [vmem:[#allocation4 + $0x630] sm:$0xff]
    %v347 = vld [vmem:[#allocation4 + $0x638] sm:$0xff]
    %v348 = vld [vmem:[#allocation4 + $0x640] sm:$0xff]
    %v349 = vld [vmem:[#allocation4 + $0x648] sm:$0xff]
    %v350 = vld [vmem:[#allocation4 + $0x650] sm:$0xff]
    %v351 = vld [vmem:[#allocation4 + $0x658] sm:$0xff]
    %v352 = vld [vmem:[#allocation4 + $0x660] sm:$0xff]
    %v353 = vld [vmem:[#allocation4 + $0x668] sm:$0xff]
    %v354 = vld [vmem:[#allocation4 + $0x670] sm:$0xff]
    %v355 = vld [vmem:[#allocation4 + $0x678] sm:$0xff]
    %v356 = vld [vmem:[#allocation4 + $0x680] sm:$0xff]
    %v357 = vld [vmem:[#allocation4 + $0x688] sm:$0xff]
    %v358 = vld [vmem:[#allocation4 + $0x690] sm:$0xff]
    %v359 = vld [vmem:[#allocation4 + $0x698] sm:$0xff]
    %v360 = vld [vmem:[#allocation4 + $0x6a0] sm:$0xff]
    %v361 = vld [vmem:[#allocation4 + $0x6a8] sm:$0xff]
    %v362 = vld [vmem:[#allocation4 + $0x6b0] sm:$0xff]
    %v363 = vld [vmem:[#allocation4 + $0x6b8] sm:$0xff]
    %v364 = vld [vmem:[#allocation4 + $0x6c0] sm:$0xff]
    %v365 = vld [vmem:[#allocation4 + $0x6c8] sm:$0xff]
    %v366 = vld [vmem:[#allocation4 + $0x6d0] sm:$0xff]
    %v367 = vld [vmem:[#allocation4 + $0x6d8] sm:$0xff]
    %v368 = vld [vmem:[#allocation4 + $0x6e0] sm:$0xff]
    %v369 = vld [vmem:[#allocation4 + $0x6e8] sm:$0xff]
    %v370 = vld [vmem:[#allocation4 + $0x6f0] sm:$0xff]
    %v371 = vld [vmem:[#allocation4 + $0x6f8] sm:$0xff]
    %v372 = vld [vmem:[#allocation4 + $0x700] sm:$0xff]
    %v373 = vld [vmem:[#allocation4 + $0x708] sm:$0xff]
    %v374 = vld [vmem:[#allocation4 + $0x710] sm:$0xff]
    %v375 = vld [vmem:[#allocation4 + $0x718] sm:$0xff]
    %v376 = vld [vmem:[#allocation4 + $0x720] sm:$0xff]
    %v377 = vld [vmem:[#allocation4 + $0x728] sm:$0xff]
    %v378 = vld [vmem:[#allocation4 + $0x730] sm:$0xff]
    %v379 = vld [vmem:[#allocation4 + $0x738] sm:$0xff]
    %v380 = vld [vmem:[#allocation4 + $0x740] sm:$0xff]
    %v381 = vld [vmem:[#allocation4 + $0x748] sm:$0xff]
    %v382 = vld [vmem:[#allocation4 + $0x750] sm:$0xff]
    %v383 = vld [vmem:[#allocation4 + $0x758] sm:$0xff]
    %v384 = vld [vmem:[#allocation4 + $0x760] sm:$0xff]
    %v385 = vld [vmem:[#allocation4 + $0x768] sm:$0xff]
    %v386 = vld [vmem:[#allocation4 + $0x770] sm:$0xff]
    %v387 = vld [vmem:[#allocation4 + $0x778] sm:$0xff]
    %v388 = vld [vmem:[#allocation4 + $0x780] sm:$0xff]
    %v389 = vld [vmem:[#allocation4 + $0x788] sm:$0xff]
    %v390 = vld [vmem:[#allocation4 + $0x790] sm:$0xff]
    %v391 = vld [vmem:[#allocation4 + $0x798] sm:$0xff]
    %v392 = vld [vmem:[#allocation4 + $0x7a0] sm:$0xff]
    %v393 = vld [vmem:[#allocation4 + $0x7a8] sm:$0xff]
    %v394 = vld [vmem:[#allocation4 + $0x7b0] sm:$0xff]
    %v395 = vld [vmem:[#allocation4 + $0x7b8] sm:$0xff]
    %v396 = vld [vmem:[#allocation4 + $0x7c0] sm:$0xff]
    %v397 = vld [vmem:[#allocation4 + $0x7c8] sm:$0xff]
    %v398 = vld [vmem:[#allocation4 + $0x7d0] sm:$0xff]
    %v399 = vld [vmem:[#allocation4 + $0x7d8] sm:$0xff]
    %v400 = vld [vmem:[#allocation4 + $0x7e0] sm:$0xff]
    %v401 = vld [vmem:[#allocation4 + $0x7e8] sm:$0xff]
    %v402 = vld [vmem:[#allocation4 + $0x7f0] sm:$0xff]
    %v403 = vld [vmem:[#allocation4 + $0x7f8] sm:$0xff]
    %v404 = vld [vmem:[#allocation4 + $0x800] sm:$0xff]
    %v405 = vld [vmem:[#allocation4 + $0x808] sm:$0xff]
    %v406 = vld [vmem:[#allocation4 + $0x810] sm:$0xff]
    %v407 = vld [vmem:[#allocation4 + $0x818] sm:$0xff]
    %v408 = vld [vmem:[#allocation4 + $0x820] sm:$0xff]
    %v409 = vld [vmem:[#allocation4 + $0x828] sm:$0xff]
    %v410 = vld [vmem:[#allocation4 + $0x830] sm:$0xff]
    %v411 = vld [vmem:[#allocation4 + $0x838] sm:$0xff]
    %v412 = vld [vmem:[#allocation4 + $0x840] sm:$0xff]
    %v413 = vld [vmem:[#allocation4 + $0x848] sm:$0xff]
    %v414 = vld [vmem:[#allocation4 + $0x850] sm:$0xff]
    %v415 = vld [vmem:[#allocation4 + $0x858] sm:$0xff]
    %v416 = vld [vmem:[#allocation4 + $0x860] sm:$0xff]
    %v417 = vld [vmem:[#allocation4 + $0x868] sm:$0xff]
    %v418 = vld [vmem:[#allocation4 + $0x870] sm:$0xff]
    %v419 = vld [vmem:[#allocation4 + $0x878] sm:$0xff]
    %v420 = vld [vmem:[#allocation4 + $0x880] sm:$0xff]
    %v421 = vld [vmem:[#allocation4 + $0x888] sm:$0xff]
    %v422 = vld [vmem:[#allocation4 + $0x890] sm:$0xff]
    %v423 = vld [vmem:[#allocation4 + $0x898] sm:$0xff]
    %v424 = vld [vmem:[#allocation4 + $0x8a0] sm:$0xff]
    %v425 = vld [vmem:[#allocation4 + $0x8a8] sm:$0xff]
    %v426 = vld [vmem:[#allocation4 + $0x8b0] sm:$0xff]
    %v427 = vld [vmem:[#allocation4 + $0x8b8] sm:$0xff]
    %v428 = vld [vmem:[#allocation4 + $0x8c0] sm:$0xff]
    %v429 = vld [vmem:[#allocation4 + $0x8c8] sm:$0xff]
    %v430 = vld [vmem:[#allocation4 + $0x8d0] sm:$0xff]
    %v431 = vld [vmem:[#allocation4 + $0x8d8] sm:$0xff]
    %v432 = vld [vmem:[#allocation4 + $0x8e0] sm:$0xff]
    %v433 = vld [vmem:[#allocation4 + $0x8e8] sm:$0xff]
    %v434 = vld [vmem:[#allocation4 + $0x8f0] sm:$0xff]
    %v435 = vld [vmem:[#allocation4 + $0x8f8] sm:$0xff]
    %v436 = vld [vmem:[#allocation4 + $0x900] sm:$0xff]
    %v437 = vld [vmem:[#allocation4 + $0x908] sm:$0xff]
    %v438 = vld [vmem:[#allocation4 + $0x910] sm:$0xff]
    %v439 = vld [vmem:[#allocation4 + $0x918] sm:$0xff]
    %v440 = vld [vmem:[#allocation4 + $0x920] sm:$0xff]
    %v441 = vld [vmem:[#allocation4 + $0x928] sm:$0xff]
    %v442 = vld [vmem:[#allocation4 + $0x930] sm:$0xff]
    %v443 = vld [vmem:[#allocation4 + $0x938] sm:$0xff]
    %v444 = vld [vmem:[#allocation4 + $0x940] sm:$0xff]
    %v445 = vld [vmem:[#allocation4 + $0x948] sm:$0xff]
    %v446 = vld [vmem:[#allocation4 + $0x950] sm:$0xff]
    %v447 = vld [vmem:[#allocation4 + $0x958] sm:$0xff]
    %v448 = vld [vmem:[#allocation4 + $0x960] sm:$0xff]
    %v449 = vld [vmem:[#allocation4 + $0x968] sm:$0xff]
    %v450 = vld [vmem:[#allocation4 + $0x970] sm:$0xff]
    %v451 = vld [vmem:[#allocation4 + $0x978] sm:$0xff]
    %v452 = vld [vmem:[#allocation4 + $0x980] sm:$0xff]
    %v453 = vld [vmem:[#allocation4 + $0x988] sm:$0xff]
    %v454 = vld [vmem:[#allocation4 + $0x990] sm:$0xff]
    %v455 = vld [vmem:[#allocation4 + $0x998] sm:$0xff]
    %v456 = vld [vmem:[#allocation4 + $0x9a0] sm:$0xff]
    %v457 = vld [vmem:[#allocation4 + $0x9a8] sm:$0xff]
    %v458 = vld [vmem:[#allocation4 + $0x9b0] sm:$0xff]
    %v459 = vld [vmem:[#allocation4 + $0x9b8] sm:$0xff]
    %v460 = vld [vmem:[#allocation4 + $0x9c0] sm:$0xff]
    %v461 = vld [vmem:[#allocation4 + $0x9c8] sm:$0xff]
    %v462 = vld [vmem:[#allocation4 + $0x9d0] sm:$0xff]
    %v463 = vld [vmem:[#allocation4 + $0x9d8] sm:$0xff]
    %v464 = vld [vmem:[#allocation4 + $0x9e0] sm:$0xff]
    %v465 = vld [vmem:[#allocation4 + $0x9e8] sm:$0xff]
    %v466 = vld [vmem:[#allocation4 + $0x9f0] sm:$0xff]
    %v467 = vld [vmem:[#allocation4 + $0x9f8] sm:$0xff]
    %v468 = vld [vmem:[#allocation4 + $0xa00] sm:$0xff]
    %v469 = vld [vmem:[#allocation4 + $0xa08] sm:$0xff]
    %v470 = vld [vmem:[#allocation4 + $0xa10] sm:$0xff]
    %v471 = vld [vmem:[#allocation4 + $0xa18] sm:$0xff]
    %v472 = vld [vmem:[#allocation4 + $0xa20] sm:$0xff]
    %v473 = vld [vmem:[#allocation4 + $0xa28] sm:$0xff]
    %v474 = vld [vmem:[#allocation4 + $0xa30] sm:$0xff]
    %v475 = vld [vmem:[#allocation4 + $0xa38] sm:$0xff]
    %v476 = vld [vmem:[#allocation4 + $0xa40] sm:$0xff]
    %v477 = vld [vmem:[#allocation4 + $0xa48] sm:$0xff]
    %v478 = vld [vmem:[#allocation4 + $0xa50] sm:$0xff]
    %v479 = vld [vmem:[#allocation4 + $0xa58] sm:$0xff]
    %v480 = vld [vmem:[#allocation4 + $0xa60] sm:$0xff]
    %v481 = vld [vmem:[#allocation4 + $0xa68] sm:$0xff]
    %v482 = vld [vmem:[#allocation4 + $0xa70] sm:$0xff]
    %v483 = vld [vmem:[#allocation4 + $0xa78] sm:$0xff]
    %v484 = vld [vmem:[#allocation4 + $0xa80] sm:$0xff]
    %v485 = vld [vmem:[#allocation4 + $0xa88] sm:$0xff]
    %v486 = vld [vmem:[#allocation4 + $0xa90] sm:$0xff]
    %v487 = vld [vmem:[#allocation4 + $0xa98] sm:$0xff]
    %v488 = vld [vmem:[#allocation4 + $0xaa0] sm:$0xff]
    %v489 = vld [vmem:[#allocation4 + $0xaa8] sm:$0xff]
    %v490 = vld [vmem:[#allocation4 + $0xab0] sm:$0xff]
    %v491 = vld [vmem:[#allocation4 + $0xab8] sm:$0xff]
    %v492 = vld [vmem:[#allocation4 + $0xac0] sm:$0xff]
    %v493 = vld [vmem:[#allocation4 + $0xac8] sm:$0xff]
    %v494 = vld [vmem:[#allocation4 + $0xad0] sm:$0xff]
    %v495 = vld [vmem:[#allocation4 + $0xad8] sm:$0xff]
    %v496 = vld [vmem:[#allocation4 + $0xae0] sm:$0xff]
    %v497 = vld [vmem:[#allocation4 + $0xae8] sm:$0xff]
    %v498 = vld [vmem:[#allocation4 + $0xaf0] sm:$0xff]
    %v499 = vld [vmem:[#allocation4 + $0xaf8] sm:$0xff]
    %v500 = vld [vmem:[#allocation4 + $0xb00] sm:$0xff]
    %v501 = vld [vmem:[#allocation4 + $0xb08] sm:$0xff]
    %v502 = vld [vmem:[#allocation4 + $0xb10] sm:$0xff]
    %v503 = vld [vmem:[#allocation4 + $0xb18] sm:$0xff]
    %v504 = vld [vmem:[#allocation4 + $0xb20] sm:$0xff]
    %v505 = vld [vmem:[#allocation4 + $0xb28] sm:$0xff]
    %v506 = vld [vmem:[#allocation4 + $0xb30] sm:$0xff]
    %v507 = vld [vmem:[#allocation4 + $0xb38] sm:$0xff]
    %v508 = vld [vmem:[#allocation4 + $0xb40] sm:$0xff]
    %v509 = vld [vmem:[#allocation4 + $0xb48] sm:$0xff]
    %v510 = vld [vmem:[#allocation4 + $0xb50] sm:$0xff]
    %v511 = vld [vmem:[#allocation4 + $0xb58] sm:$0xff]
    %v512 = vld [vmem:[#allocation4 + $0xb60] sm:$0xff]
    %v513 = vld [vmem:[#allocation4 + $0xb68] sm:$0xff]
    %v514 = vld [vmem:[#allocation4 + $0xb70] sm:$0xff]
    %v515 = vld [vmem:[#allocation4 + $0xb78] sm:$0xff]
    %v516 = vld [vmem:[#allocation4 + $0xb80] sm:$0xff]
    %v517 = vld [vmem:[#allocation4 + $0xb88] sm:$0xff]
    %v518 = vld [vmem:[#allocation4 + $0xb90] sm:$0xff]
    %v519 = vld [vmem:[#allocation4 + $0xb98] sm:$0xff]
    %v520 = vld [vmem:[#allocation4 + $0xba0] sm:$0xff]
    %v521 = vld [vmem:[#allocation4 + $0xba8] sm:$0xff]
    %v522 = vld [vmem:[#allocation4 + $0xbb0] sm:$0xff]
    %v523 = vld [vmem:[#allocation4 + $0xbb8] sm:$0xff]
    %v524 = vld [vmem:[#allocation4 + $0xbc0] sm:$0xff]
    %v525 = vld [vmem:[#allocation4 + $0xbc8] sm:$0xff]
    %v526 = vld [vmem:[#allocation4 + $0xbd0] sm:$0xff]
    %v527 = vld [vmem:[#allocation4 + $0xbd8] sm:$0xff]
    %v528 = vld [vmem:[#allocation4 + $0xbe0] sm:$0xff]
    %v529 = vld [vmem:[#allocation4 + $0xbe8] sm:$0xff]
    %v530 = vld [vmem:[#allocation4 + $0xbf0] sm:$0xff]
    %v531 = vld [vmem:[#allocation4 + $0xbf8] sm:$0xff]
    %v532 = vld [vmem:[#allocation4 + $0xc00] sm:$0xff]
    %v533 = vld [vmem:[#allocation4 + $0xc08] sm:$0xff]
    %v534 = vld [vmem:[#allocation4 + $0xc10] sm:$0xff]
    %v535 = vld [vmem:[#allocation4 + $0xc18] sm:$0xff]
    %v536 = vld [vmem:[#allocation4 + $0xc20] sm:$0xff]
    %v537 = vld [vmem:[#allocation4 + $0xc28] sm:$0xff]
    %v538 = vld [vmem:[#allocation4 + $0xc30] sm:$0xff]
    %v539 = vld [vmem:[#allocation4 + $0xc38] sm:$0xff]
    %v540 = vld [vmem:[#allocation4 + $0xc40] sm:$0xff]
    %v541 = vld [vmem:[#allocation4 + $0xc48] sm:$0xff]
    %v542 = vld [vmem:[#allocation4 + $0xc50] sm:$0xff]
    %v543 = vld [vmem:[#allocation4 + $0xc58] sm:$0xff]
    %v544 = vld [vmem:[#allocation4 + $0xc60] sm:$0xff]
    %v545 = vld [vmem:[#allocation4 + $0xc68] sm:$0xff]
    %v546 = vld [vmem:[#allocation4 + $0xc70] sm:$0xff]
    %v547 = vld [vmem:[#allocation4 + $0xc78] sm:$0xff]
    %v548 = vld [vmem:[#allocation4 + $0xc80] sm:$0xff]
    %v549 = vld [vmem:[#allocation4 + $0xc88] sm:$0xff]
    %v550 = vld [vmem:[#allocation4 + $0xc90] sm:$0xff]
    %v551 = vld [vmem:[#allocation4 + $0xc98] sm:$0xff]
    %v552 = vld [vmem:[#allocation4 + $0xca0] sm:$0xff]
    %v553 = vld [vmem:[#allocation4 + $0xca8] sm:$0xff]
    %v554 = vld [vmem:[#allocation4 + $0xcb0] sm:$0xff]
    %v555 = vld [vmem:[#allocation4 + $0xcb8] sm:$0xff]
    %v556 = vld [vmem:[#allocation4 + $0xcc0] sm:$0xff]
    %v557 = vld [vmem:[#allocation4 + $0xcc8] sm:$0xff]
    %v558 = vld [vmem:[#allocation4 + $0xcd0] sm:$0xff]
    %v559 = vld [vmem:[#allocation4 + $0xcd8] sm:$0xff]
    %v560 = vld [vmem:[#allocation4 + $0xce0] sm:$0xff]
    %v561 = vld [vmem:[#allocation4 + $0xce8] sm:$0xff]
    %v562 = vld [vmem:[#allocation4 + $0xcf0] sm:$0xff]
    %v563 = vld [vmem:[#allocation4 + $0xcf8] sm:$0xff]
    %v564 = vld [vmem:[#allocation4 + $0xd00] sm:$0xff]
    %v565 = vld [vmem:[#allocation4 + $0xd08] sm:$0xff]
    %v566 = vld [vmem:[#allocation4 + $0xd10] sm:$0xff]
    %v567 = vld [vmem:[#allocation4 + $0xd18] sm:$0xff]
    %v568 = vld [vmem:[#allocation4 + $0xd20] sm:$0xff]
    %v569 = vld [vmem:[#allocation4 + $0xd28] sm:$0xff]
    %v570 = vld [vmem:[#allocation4 + $0xd30] sm:$0xff]
    %v571 = vld [vmem:[#allocation4 + $0xd38] sm:$0xff]
    %v572 = vld [vmem:[#allocation4 + $0xd40] sm:$0xff]
    %v573 = vld [vmem:[#allocation4 + $0xd48] sm:$0xff]
    %v574 = vld [vmem:[#allocation4 + $0xd50] sm:$0xff]
    %v575 = vld [vmem:[#allocation4 + $0xd58] sm:$0xff]
    %v576 = vld [vmem:[#allocation4 + $0xd60] sm:$0xff]
    %v577 = vld [vmem:[#allocation4 + $0xd68] sm:$0xff]
    %v578 = vld [vmem:[#allocation4 + $0xd70] sm:$0xff]
    %v579 = vld [vmem:[#allocation4 + $0xd78] sm:$0xff]
    %v580 = vld [vmem:[#allocation4 + $0xd80] sm:$0xff]
    %v581 = vld [vmem:[#allocation4 + $0xd88] sm:$0xff]
    %v582 = vld [vmem:[#allocation4 + $0xd90] sm:$0xff]
    %v583 = vld [vmem:[#allocation4 + $0xd98] sm:$0xff]
    %v584 = vld [vmem:[#allocation4 + $0xda0] sm:$0xff]
    %v585 = vld [vmem:[#allocation4 + $0xda8] sm:$0xff]
    %v586 = vld [vmem:[#allocation4 + $0xdb0] sm:$0xff]
    %v587 = vld [vmem:[#allocation4 + $0xdb8] sm:$0xff]
    %v588 = vld [vmem:[#allocation4 + $0xdc0] sm:$0xff]
    %v589 = vld [vmem:[#allocation4 + $0xdc8] sm:$0xff]
    %v590 = vld [vmem:[#allocation4 + $0xdd0] sm:$0xff]
    %v591 = vld [vmem:[#allocation4 + $0xdd8] sm:$0xff]
    %v592 = vld [vmem:[#allocation4 + $0xde0] sm:$0xff]
    %v593 = vld [vmem:[#allocation4 + $0xde8] sm:$0xff]
    %v594 = vld [vmem:[#allocation4 + $0xdf0] sm:$0xff]
    %v595 = vld [vmem:[#allocation4 + $0xdf8] sm:$0xff]
    %v596 = vld [vmem:[#allocation4 + $0xe00] sm:$0xff]
    %v597 = vld [vmem:[#allocation4 + $0xe08] sm:$0xff]
    %v598 = vld [vmem:[#allocation4 + $0xe10] sm:$0xff]
    %v599 = vld [vmem:[#allocation4 + $0xe18] sm:$0xff]
    %v600 = vld [vmem:[#allocation4 + $0xe20] sm:$0xff]
    %v601 = vld [vmem:[#allocation4 + $0xe28] sm:$0xff]
    %v602 = vld [vmem:[#allocation4 + $0xe30] sm:$0xff]
    %v603 = vld [vmem:[#allocation4 + $0xe38] sm:$0xff]
    %v604 = vld [vmem:[#allocation4 + $0xe40] sm:$0xff]
    %v605 = vld [vmem:[#allocation4 + $0xe48] sm:$0xff]
    %v606 = vld [vmem:[#allocation4 + $0xe50] sm:$0xff]
    %v607 = vld [vmem:[#allocation4 + $0xe58] sm:$0xff]
    %v608 = vld [vmem:[#allocation4 + $0xe60] sm:$0xff]
    %v609 = vld [vmem:[#allocation4 + $0xe68] sm:$0xff]
    %v610 = vld [vmem:[#allocation4 + $0xe70] sm:$0xff]
    %v611 = vld [vmem:[#allocation4 + $0xe78] sm:$0xff]
    %v612 = vld [vmem:[#allocation4 + $0xe80] sm:$0xff]
    %v613 = vld [vmem:[#allocation4 + $0xe88] sm:$0xff]
    %v614 = vld [vmem:[#allocation4 + $0xe90] sm:$0xff]
    %v615 = vld [vmem:[#allocation4 + $0xe98] sm:$0xff]
    %v616 = vld [vmem:[#allocation4 + $0xea0] sm:$0xff]
    %v617 = vld [vmem:[#allocation4 + $0xea8] sm:$0xff]
    %v618 = vld [vmem:[#allocation4 + $0xeb0] sm:$0xff]
    %v619 = vld [vmem:[#allocation4 + $0xeb8] sm:$0xff]
    %v620 = vld [vmem:[#allocation4 + $0xec0] sm:$0xff]
    %v621 = vld [vmem:[#allocation4 + $0xec8] sm:$0xff]
    %v622 = vld [vmem:[#allocation4 + $0xed0] sm:$0xff]
    %v623 = vld [vmem:[#allocation4 + $0xed8] sm:$0xff]
    %v624 = vld [vmem:[#allocation4 + $0xee0] sm:$0xff]
    %v625 = vld [vmem:[#allocation4 + $0xee8] sm:$0xff]
    %v626 = vld [vmem:[#allocation4 + $0xef0] sm:$0xff]
    %v627 = vld [vmem:[#allocation4 + $0xef8] sm:$0xff]
    %v628 = vld [vmem:[#allocation4 + $0xf00] sm:$0xff]
    %v629 = vld [vmem:[#allocation4 + $0xf08] sm:$0xff]
    %v630 = vld [vmem:[#allocation4 + $0xf10] sm:$0xff]
    %v631 = vld [vmem:[#allocation4 + $0xf18] sm:$0xff]
    %v632 = vld [vmem:[#allocation4 + $0xf20] sm:$0xff]
    %v633 = vld [vmem:[#allocation4 + $0xf28] sm:$0xff]
    %v634 = vld [vmem:[#allocation4 + $0xf30] sm:$0xff]
    %v635 = vld [vmem:[#allocation4 + $0xf38] sm:$0xff]
    %v636 = vld [vmem:[#allocation4 + $0xf40] sm:$0xff]
    %v637 = vld [vmem:[#allocation4 + $0xf48] sm:$0xff]
    %v638 = vld [vmem:[#allocation4 + $0xf50] sm:$0xff]
    %v639 = vld [vmem:[#allocation4 + $0xf58] sm:$0xff]
    %v640 = vld [vmem:[#allocation4 + $0xf60] sm:$0xff]
    %v641 = vld [vmem:[#allocation4 + $0xf68] sm:$0xff]
    %v642 = vld [vmem:[#allocation4 + $0xf70] sm:$0xff]
    %v643 = vld [vmem:[#allocation4 + $0xf78] sm:$0xff]
    %v644 = vld [vmem:[#allocation4 + $0xf80] sm:$0xff]
    %v645 = vld [vmem:[#allocation4 + $0xf88] sm:$0xff]
    %v646 = vld [vmem:[#allocation4 + $0xf90] sm:$0xff]
    %v647 = vld [vmem:[#allocation4 + $0xf98] sm:$0xff]
    %v648 = vld [vmem:[#allocation4 + $0xfa0] sm:$0xff]
    %v649 = vld [vmem:[#allocation4 + $0xfa8] sm:$0xff]
    %v650 = vld [vmem:[#allocation4 + $0xfb0] sm:$0xff]
    %v651 = vld [vmem:[#allocation4 + $0xfb8] sm:$0xff]
    %v652 = vld [vmem:[#allocation4 + $0xfc0] sm:$0xff]
    %v653 = vld [vmem:[#allocation4 + $0xfc8] sm:$0xff]
    %v654 = vld [vmem:[#allocation4 + $0xfd0] sm:$0xff]
    %v655 = vld [vmem:[#allocation4 + $0xfd8] sm:$0xff]
    %v656 = vld [vmem:[#allocation4 + $0xfe0] sm:$0xff]
    %v657 = vld [vmem:[#allocation4 + $0xfe8] sm:$0xff]
    %v658 = vld [vmem:[#allocation4 + $0xff0] sm:$0xff]
    %v659 = vld [vmem:[#allocation4 + $0xff8] sm:$0xff]
    %v660 = vld [vmem:[#allocation6] sm:$0xf]
    %v662 = vperm.slane %v660, 0
    %v663 = vperm.slane %v660, 1
    %v664 = vperm.slane %v660, 2
    %v665 = vperm.slane %v660, 3
    %670 = vmatpush.msra.mxu0 %v208
    %671 = vmatpush.msra.mxu0 %v204
    %672 = vmatpush.msra.mxu0 %v200
    %673 = vmatpush.msra.mxu0 %v196
    %674 = vmatpush.msra.mxu0 %v192
    %675 = vmatpush.msra.mxu0 %v188
    %676 = vmatpush.msra.mxu0 %v184
    %677 = vmatpush.msra.mxu0 %v180
    %678 = vmatpush.msra.mxu0 %v176
    %679 = vmatpush.msra.mxu0 %v172
    %680 = vmatpush.msra.mxu0 %v168
    %681 = vmatpush.msra.mxu0 %v164
    %682 = vmatpush.msra.mxu0 %v160
    %683 = vmatpush.msra.mxu0 %v156
    %684 = vmatpush.msra.mxu0 %v152
    %685 = vmatpush.msra.mxu0 %v148
    %686 = vmatmul.f32.gmra.mxu0 %v116
    %v687 = vpop.f32.mrf.mxu0
    %v688 = vadd.f32 %v662, %v687
    %689 = vmatmul.f32.gmra.mxu0 %v124
    %v690 = vpop.f32.mrf.mxu0
    %v691 = vadd.f32 %v662, %v690
    %692 = vmatmul.f32.gmra.mxu0 %v132
    %v693 = vpop.f32.mrf.mxu0
    %v694 = vadd.f32 %v662, %v693
    %695 = vmatmul.f32.gmra.mxu0 %v140
    %v696 = vpop.f32.mrf.mxu0
    %v697 = vadd.f32 %v662, %v696
    %698 = vdwg.mxu0
    %699 = vmatpush.msra.mxu0 %v272
    %700 = vmatpush.msra.mxu0 %v268
    %701 = vmatpush.msra.mxu0 %v264
    %702 = vmatpush.msra.mxu0 %v260
    %703 = vmatpush.msra.mxu0 %v256
    %704 = vmatpush.msra.mxu0 %v252
    %705 = vmatpush.msra.mxu0 %v248
    %706 = vmatpush.msra.mxu0 %v244
    %707 = vmatpush.msra.mxu0 %v240
    %708 = vmatpush.msra.mxu0 %v236
    %709 = vmatpush.msra.mxu0 %v232
    %710 = vmatpush.msra.mxu0 %v228
    %711 = vmatpush.msra.mxu0 %v224
    %712 = vmatpush.msra.mxu0 %v220
    %713 = vmatpush.msra.mxu0 %v216
    %714 = vmatpush.msra.mxu0 %v212
    %715 = vmatmul.f32.gmra.mxu0 %v117
    %v716 = vpop.f32.mrf.mxu0
    %v717 = vadd.f32 %v688, %v716
    %718 = vmatmul.f32.gmra.mxu0 %v125
    %v719 = vpop.f32.mrf.mxu0
    %v720 = vadd.f32 %v691, %v719
    %721 = vmatmul.f32.gmra.mxu0 %v133
    %v722 = vpop.f32.mrf.mxu0
    %v723 = vadd.f32 %v694, %v722
    %724 = vmatmul.f32.gmra.mxu0 %v141
    %v725 = vpop.f32.mrf.mxu0
    %v726 = vadd.f32 %v697, %v725
    %727 = vdwg.mxu0
    %728 = vmatpush.msra.mxu0 %v336
    %729 = vmatpush.msra.mxu0 %v332
    %730 = vmatpush.msra.mxu0 %v328
    %731 = vmatpush.msra.mxu0 %v324
    %732 = vmatpush.msra.mxu0 %v320
    %733 = vmatpush.msra.mxu0 %v316
    %734 = vmatpush.msra.mxu0 %v312
    %735 = vmatpush.msra.mxu0 %v308
    %736 = vmatpush.msra.mxu0 %v304
    %737 = vmatpush.msra.mxu0 %v300
    %738 = vmatpush.msra.mxu0 %v296
    %739 = vmatpush.msra.mxu0 %v292
    %740 = vmatpush.msra.mxu0 %v288
    %741 = vmatpush.msra.mxu0 %v284
    %742 = vmatpush.msra.mxu0 %v280
    %743 = vmatpush.msra.mxu0 %v276
    %744 = vmatmul.f32.gmra.mxu0 %v118
    %v745 = vpop.f32.mrf.mxu0
    %v746 = vadd.f32 %v717, %v745
    %747 = vmatmul.f32.gmra.mxu0 %v126
    %v748 = vpop.f32.mrf.mxu0
    %v749 = vadd.f32 %v720, %v748
    %750 = vmatmul.f32.gmra.mxu0 %v134
    %v751 = vpop.f32.mrf.mxu0
    %v752 = vadd.f32 %v723, %v751
    %753 = vmatmul.f32.gmra.mxu0 %v142
    %v754 = vpop.f32.mrf.mxu0
    %v755 = vadd.f32 %v726, %v754
    %756 = vdwg.mxu0
    %757 = vmatpush.msra.mxu0 %v400
    %758 = vmatpush.msra.mxu0 %v396
    %759 = vmatpush.msra.mxu0 %v392
    %760 = vmatpush.msra.mxu0 %v388
    %761 = vmatpush.msra.mxu0 %v384
    %762 = vmatpush.msra.mxu0 %v380
    %763 = vmatpush.msra.mxu0 %v376
    %764 = vmatpush.msra.mxu0 %v372
    %765 = vmatpush.msra.mxu0 %v368
    %766 = vmatpush.msra.mxu0 %v364
    %767 = vmatpush.msra.mxu0 %v360
    %768 = vmatpush.msra.mxu0 %v356
    %769 = vmatpush.msra.mxu0 %v352
    %770 = vmatpush.msra.mxu0 %v348
    %771 = vmatpush.msra.mxu0 %v344
    %772 = vmatpush.msra.mxu0 %v340
    %773 = vmatmul.f32.gmra.mxu0 %v119
    %v774 = vpop.f32.mrf.mxu0
    %v775 = vadd.f32 %v746, %v774
    %776 = vmatmul.f32.gmra.mxu0 %v127
    %v777 = vpop.f32.mrf.mxu0
    %v778 = vadd.f32 %v749, %v777
    %779 = vmatmul.f32.gmra.mxu0 %v135
    %v780 = vpop.f32.mrf.mxu0
    %v781 = vadd.f32 %v752, %v780
    %782 = vmatmul.f32.gmra.mxu0 %v143
    %v783 = vpop.f32.mrf.mxu0
    %v784 = vadd.f32 %v755, %v783
    %785 = vdwg.mxu0
    %786 = vmatpush.msra.mxu0 %v464
    %787 = vmatpush.msra.mxu0 %v460
    %788 = vmatpush.msra.mxu0 %v456
    %789 = vmatpush.msra.mxu0 %v452
    %790 = vmatpush.msra.mxu0 %v448
    %791 = vmatpush.msra.mxu0 %v444
    %792 = vmatpush.msra.mxu0 %v440
    %793 = vmatpush.msra.mxu0 %v436
    %794 = vmatpush.msra.mxu0 %v432
    %795 = vmatpush.msra.mxu0 %v428
    %796 = vmatpush.msra.mxu0 %v424
    %797 = vmatpush.msra.mxu0 %v420
    %798 = vmatpush.msra.mxu0 %v416
    %799 = vmatpush.msra.mxu0 %v412
    %800 = vmatpush.msra.mxu0 %v408
    %801 = vmatpush.msra.mxu0 %v404
    %802 = vmatmul.f32.gmra.mxu0 %v120
    %v803 = vpop.f32.mrf.mxu0
    %v804 = vadd.f32 %v775, %v803
    %805 = vmatmul.f32.gmra.mxu0 %v128
    %v806 = vpop.f32.mrf.mxu0
    %v807 = vadd.f32 %v778, %v806
    %808 = vmatmul.f32.gmra.mxu0 %v136
    %v809 = vpop.f32.mrf.mxu0
    %v810 = vadd.f32 %v781, %v809
    %811 = vmatmul.f32.gmra.mxu0 %v144
    %v812 = vpop.f32.mrf.mxu0
    %v813 = vadd.f32 %v784, %v812
    %814 = vdwg.mxu0
    %815 = vmatpush.msra.mxu0 %v528
    %816 = vmatpush.msra.mxu0 %v524
    %817 = vmatpush.msra.mxu0 %v520
    %818 = vmatpush.msra.mxu0 %v516
    %819 = vmatpush.msra.mxu0 %v512
    %820 = vmatpush.msra.mxu0 %v508
    %821 = vmatpush.msra.mxu0 %v504
    %822 = vmatpush.msra.mxu0 %v500
    %823 = vmatpush.msra.mxu0 %v496
    %824 = vmatpush.msra.mxu0 %v492
    %825 = vmatpush.msra.mxu0 %v488
    %826 = vmatpush.msra.mxu0 %v484
    %827 = vmatpush.msra.mxu0 %v480
    %828 = vmatpush.msra.mxu0 %v476
    %829 = vmatpush.msra.mxu0 %v472
    %830 = vmatpush.msra.mxu0 %v468
    %831 = vmatmul.f32.gmra.mxu0 %v121
    %v832 = vpop.f32.mrf.mxu0
    %v833 = vadd.f32 %v804, %v832
    %834 = vmatmul.f32.gmra.mxu0 %v129
    %v835 = vpop.f32.mrf.mxu0
    %v836 = vadd.f32 %v807, %v835
    %837 = vmatmul.f32.gmra.mxu0 %v137
    %v838 = vpop.f32.mrf.mxu0
    %v839 = vadd.f32 %v810, %v838
    %840 = vmatmul.f32.gmra.mxu0 %v145
    %v841 = vpop.f32.mrf.mxu0
    %v842 = vadd.f32 %v813, %v841
    %843 = vdwg.mxu0
    %844 = vmatpush.msra.mxu0 %v592
    %845 = vmatpush.msra.mxu0 %v588
    %846 = vmatpush.msra.mxu0 %v584
    %847 = vmatpush.msra.mxu0 %v580
    %848 = vmatpush.msra.mxu0 %v576
    %849 = vmatpush.msra.mxu0 %v572
    %850 = vmatpush.msra.mxu0 %v568
    %851 = vmatpush.msra.mxu0 %v564
    %852 = vmatpush.msra.mxu0 %v560
    %853 = vmatpush.msra.mxu0 %v556
    %854 = vmatpush.msra.mxu0 %v552
    %855 = vmatpush.msra.mxu0 %v548
    %856 = vmatpush.msra.mxu0 %v544
    %857 = vmatpush.msra.mxu0 %v540
    %858 = vmatpush.msra.mxu0 %v536
    %859 = vmatpush.msra.mxu0 %v532
    %860 = vmatmul.f32.gmra.mxu0 %v122
    %v861 = vpop.f32.mrf.mxu0
    %v862 = vadd.f32 %v833, %v861
    %863 = vmatmul.f32.gmra.mxu0 %v130
    %v864 = vpop.f32.mrf.mxu0
    %v865 = vadd.f32 %v836, %v864
    %866 = vmatmul.f32.gmra.mxu0 %v138
    %v867 = vpop.f32.mrf.mxu0
    %v868 = vadd.f32 %v839, %v867
    %869 = vmatmul.f32.gmra.mxu0 %v146
    %v870 = vpop.f32.mrf.mxu0
    %v871 = vadd.f32 %v842, %v870
    %872 = vdwg.mxu0
    %873 = vmatpush.msra.mxu0 %v656
    %874 = vmatpush.msra.mxu0 %v652
    %875 = vmatpush.msra.mxu0 %v648
    %876 = vmatpush.msra.mxu0 %v644
    %877 = vmatpush.msra.mxu0 %v640
    %878 = vmatpush.msra.mxu0 %v636
    %879 = vmatpush.msra.mxu0 %v632
    %880 = vmatpush.msra.mxu0 %v628
    %881 = vmatpush.msra.mxu0 %v624
    %882 = vmatpush.msra.mxu0 %v620
    %883 = vmatpush.msra.mxu0 %v616
    %884 = vmatpush.msra.mxu0 %v612
    %885 = vmatpush.msra.mxu0 %v608
    %886 = vmatpush.msra.mxu0 %v604
    %887 = vmatpush.msra.mxu0 %v600
    %888 = vmatpush.msra.mxu0 %v596
    %889 = vmatmul.f32.gmra.mxu0 %v123
    %v890 = vpop.f32.mrf.mxu0
    %v891 = vadd.f32 %v862, %v890
    %892 = vmatmul.f32.gmra.mxu0 %v131
    %v893 = vpop.f32.mrf.mxu0
    %v894 = vadd.f32 %v865, %v893
    %895 = vmatmul.f32.gmra.mxu0 %v139
    %v896 = vpop.f32.mrf.mxu0
    %v897 = vadd.f32 %v868, %v896
    %898 = vmatmul.f32.gmra.mxu0 %v147
    %v899 = vpop.f32.mrf.mxu0
    %v900 = vadd.f32 %v871, %v899
    %901 = vdwg.mxu0
    %902 = vmatpush.msra.mxu0 %v209
    %903 = vmatpush.msra.mxu0 %v205
    %904 = vmatpush.msra.mxu0 %v201
    %905 = vmatpush.msra.mxu0 %v197
    %906 = vmatpush.msra.mxu0 %v193
    %907 = vmatpush.msra.mxu0 %v189
    %908 = vmatpush.msra.mxu0 %v185
    %909 = vmatpush.msra.mxu0 %v181
    %910 = vmatpush.msra.mxu0 %v177
    %911 = vmatpush.msra.mxu0 %v173
    %912 = vmatpush.msra.mxu0 %v169
    %913 = vmatpush.msra.mxu0 %v165
    %914 = vmatpush.msra.mxu0 %v161
    %915 = vmatpush.msra.mxu0 %v157
    %916 = vmatpush.msra.mxu0 %v153
    %917 = vmatpush.msra.mxu0 %v149
    %918 = vmatmul.f32.gmra.mxu0 %v116
    %v919 = vpop.f32.mrf.mxu0
    %v920 = vadd.f32 %v663, %v919
    %921 = vmatmul.f32.gmra.mxu0 %v124
    %v922 = vpop.f32.mrf.mxu0
    %v923 = vadd.f32 %v663, %v922
    %924 = vmatmul.f32.gmra.mxu0 %v132
    %v925 = vpop.f32.mrf.mxu0
    %v926 = vadd.f32 %v663, %v925
    %927 = vmatmul.f32.gmra.mxu0 %v140
    %v928 = vpop.f32.mrf.mxu0
    %v929 = vadd.f32 %v663, %v928
    %930 = vdwg.mxu0
    %931 = vmatpush.msra.mxu0 %v273
    %932 = vmatpush.msra.mxu0 %v269
    %933 = vmatpush.msra.mxu0 %v265
    %934 = vmatpush.msra.mxu0 %v261
    %935 = vmatpush.msra.mxu0 %v257
    %936 = vmatpush.msra.mxu0 %v253
    %937 = vmatpush.msra.mxu0 %v249
    %938 = vmatpush.msra.mxu0 %v245
    %939 = vmatpush.msra.mxu0 %v241
    %940 = vmatpush.msra.mxu0 %v237
    %941 = vmatpush.msra.mxu0 %v233
    %942 = vmatpush.msra.mxu0 %v229
    %943 = vmatpush.msra.mxu0 %v225
    %944 = vmatpush.msra.mxu0 %v221
    %945 = vmatpush.msra.mxu0 %v217
    %946 = vmatpush.msra.mxu0 %v213
    %947 = vmatmul.f32.gmra.mxu0 %v117
    %v948 = vpop.f32.mrf.mxu0
    %v949 = vadd.f32 %v920, %v948
    %950 = vmatmul.f32.gmra.mxu0 %v125
    %v951 = vpop.f32.mrf.mxu0
    %v952 = vadd.f32 %v923, %v951
    %953 = vmatmul.f32.gmra.mxu0 %v133
    %v954 = vpop.f32.mrf.mxu0
    %v955 = vadd.f32 %v926, %v954
    %956 = vmatmul.f32.gmra.mxu0 %v141
    %v957 = vpop.f32.mrf.mxu0
    %v958 = vadd.f32 %v929, %v957
    %959 = vdwg.mxu0
    %960 = vmatpush.msra.mxu0 %v337
    %961 = vmatpush.msra.mxu0 %v333
    %962 = vmatpush.msra.mxu0 %v329
    %963 = vmatpush.msra.mxu0 %v325
    %964 = vmatpush.msra.mxu0 %v321
    %965 = vmatpush.msra.mxu0 %v317
    %966 = vmatpush.msra.mxu0 %v313
    %967 = vmatpush.msra.mxu0 %v309
    %968 = vmatpush.msra.mxu0 %v305
    %969 = vmatpush.msra.mxu0 %v301
    %970 = vmatpush.msra.mxu0 %v297
    %971 = vmatpush.msra.mxu0 %v293
    %972 = vmatpush.msra.mxu0 %v289
    %973 = vmatpush.msra.mxu0 %v285
    %974 = vmatpush.msra.mxu0 %v281
    %975 = vmatpush.msra.mxu0 %v277
    %976 = vmatmul.f32.gmra.mxu0 %v118
    %v977 = vpop.f32.mrf.mxu0
    %v978 = vadd.f32 %v949, %v977
    %979 = vmatmul.f32.gmra.mxu0 %v126
    %v980 = vpop.f32.mrf.mxu0
    %v981 = vadd.f32 %v952, %v980
    %982 = vmatmul.f32.gmra.mxu0 %v134
    %v983 = vpop.f32.mrf.mxu0
    %v984 = vadd.f32 %v955, %v983
    %985 = vmatmul.f32.gmra.mxu0 %v142
    %v986 = vpop.f32.mrf.mxu0
    %v987 = vadd.f32 %v958, %v986
    %988 = vdwg.mxu0
    %989 = vmatpush.msra.mxu0 %v401
    %990 = vmatpush.msra.mxu0 %v397
    %991 = vmatpush.msra.mxu0 %v393
    %992 = vmatpush.msra.mxu0 %v389
    %993 = vmatpush.msra.mxu0 %v385
    %994 = vmatpush.msra.mxu0 %v381
    %995 = vmatpush.msra.mxu0 %v377
    %996 = vmatpush.msra.mxu0 %v373
    %997 = vmatpush.msra.mxu0 %v369
    %998 = vmatpush.msra.mxu0 %v365
    %999 = vmatpush.msra.mxu0 %v361
    %1000 = vmatpush.msra.mxu0 %v357
    %1001 = vmatpush.msra.mxu0 %v353
    %1002 = vmatpush.msra.mxu0 %v349
    %1003 = vmatpush.msra.mxu0 %v345
    %1004 = vmatpush.msra.mxu0 %v341
    %1005 = vmatmul.f32.gmra.mxu0 %v119
    %v1006 = vpop.f32.mrf.mxu0
    %v1007 = vadd.f32 %v978, %v1006
    %1008 = vmatmul.f32.gmra.mxu0 %v127
    %v1009 = vpop.f32.mrf.mxu0
    %v1010 = vadd.f32 %v981, %v1009
    %1011 = vmatmul.f32.gmra.mxu0 %v135
    %v1012 = vpop.f32.mrf.mxu0
    %v1013 = vadd.f32 %v984, %v1012
    %1014 = vmatmul.f32.gmra.mxu0 %v143
    %v1015 = vpop.f32.mrf.mxu0
    %v1016 = vadd.f32 %v987, %v1015
    %1017 = vdwg.mxu0
    %1018 = vmatpush.msra.mxu0 %v465
    %1019 = vmatpush.msra.mxu0 %v461
    %1020 = vmatpush.msra.mxu0 %v457
    %1021 = vmatpush.msra.mxu0 %v453
    %1022 = vmatpush.msra.mxu0 %v449
    %1023 = vmatpush.msra.mxu0 %v445
    %1024 = vmatpush.msra.mxu0 %v441
    %1025 = vmatpush.msra.mxu0 %v437
    %1026 = vmatpush.msra.mxu0 %v433
    %1027 = vmatpush.msra.mxu0 %v429
    %1028 = vmatpush.msra.mxu0 %v425
    %1029 = vmatpush.msra.mxu0 %v421
    %1030 = vmatpush.msra.mxu0 %v417
    %1031 = vmatpush.msra.mxu0 %v413
    %1032 = vmatpush.msra.mxu0 %v409
    %1033 = vmatpush.msra.mxu0 %v405
    %1034 = vmatmul.f32.gmra.mxu0 %v120
    %v1035 = vpop.f32.mrf.mxu0
    %v1036 = vadd.f32 %v1007, %v1035
    %1037 = vmatmul.f32.gmra.mxu0 %v128
    %v1038 = vpop.f32.mrf.mxu0
    %v1039 = vadd.f32 %v1010, %v1038
    %1040 = vmatmul.f32.gmra.mxu0 %v136
    %v1041 = vpop.f32.mrf.mxu0
    %v1042 = vadd.f32 %v1013, %v1041
    %1043 = vmatmul.f32.gmra.mxu0 %v144
    %v1044 = vpop.f32.mrf.mxu0
    %v1045 = vadd.f32 %v1016, %v1044
    %1046 = vdwg.mxu0
    %1047 = vmatpush.msra.mxu0 %v529
    %1048 = vmatpush.msra.mxu0 %v525
    %1049 = vmatpush.msra.mxu0 %v521
    %1050 = vmatpush.msra.mxu0 %v517
    %1051 = vmatpush.msra.mxu0 %v513
    %1052 = vmatpush.msra.mxu0 %v509
    %1053 = vmatpush.msra.mxu0 %v505
    %1054 = vmatpush.msra.mxu0 %v501
    %1055 = vmatpush.msra.mxu0 %v497
    %1056 = vmatpush.msra.mxu0 %v493
    %1057 = vmatpush.msra.mxu0 %v489
    %1058 = vmatpush.msra.mxu0 %v485
    %1059 = vmatpush.msra.mxu0 %v481
    %1060 = vmatpush.msra.mxu0 %v477
    %1061 = vmatpush.msra.mxu0 %v473
    %1062 = vmatpush.msra.mxu0 %v469
    %1063 = vmatmul.f32.gmra.mxu0 %v121
    %v1064 = vpop.f32.mrf.mxu0
    %v1065 = vadd.f32 %v1036, %v1064
    %1066 = vmatmul.f32.gmra.mxu0 %v129
    %v1067 = vpop.f32.mrf.mxu0
    %v1068 = vadd.f32 %v1039, %v1067
    %1069 = vmatmul.f32.gmra.mxu0 %v137
    %v1070 = vpop.f32.mrf.mxu0
    %v1071 = vadd.f32 %v1042, %v1070
    %1072 = vmatmul.f32.gmra.mxu0 %v145
    %v1073 = vpop.f32.mrf.mxu0
    %v1074 = vadd.f32 %v1045, %v1073
    %1075 = vdwg.mxu0
    %1076 = vmatpush.msra.mxu0 %v593
    %1077 = vmatpush.msra.mxu0 %v589
    %1078 = vmatpush.msra.mxu0 %v585
    %1079 = vmatpush.msra.mxu0 %v581
    %1080 = vmatpush.msra.mxu0 %v577
    %1081 = vmatpush.msra.mxu0 %v573
    %1082 = vmatpush.msra.mxu0 %v569
    %1083 = vmatpush.msra.mxu0 %v565
    %1084 = vmatpush.msra.mxu0 %v561
    %1085 = vmatpush.msra.mxu0 %v557
    %1086 = vmatpush.msra.mxu0 %v553
    %1087 = vmatpush.msra.mxu0 %v549
    %1088 = vmatpush.msra.mxu0 %v545
    %1089 = vmatpush.msra.mxu0 %v541
    %1090 = vmatpush.msra.mxu0 %v537
    %1091 = vmatpush.msra.mxu0 %v533
    %1092 = vmatmul.f32.gmra.mxu0 %v122
    %v1093 = vpop.f32.mrf.mxu0
    %v1094 = vadd.f32 %v1065, %v1093
    %1095 = vmatmul.f32.gmra.mxu0 %v130
    %v1096 = vpop.f32.mrf.mxu0
    %v1097 = vadd.f32 %v1068, %v1096
    %1098 = vmatmul.f32.gmra.mxu0 %v138
    %v1099 = vpop.f32.mrf.mxu0
    %v1100 = vadd.f32 %v1071, %v1099
    %1101 = vmatmul.f32.gmra.mxu0 %v146
    %v1102 = vpop.f32.mrf.mxu0
    %v1103 = vadd.f32 %v1074, %v1102
    %1104 = vdwg.mxu0
    %1105 = vmatpush.msra.mxu0 %v657
    %1106 = vmatpush.msra.mxu0 %v653
    %1107 = vmatpush.msra.mxu0 %v649
    %1108 = vmatpush.msra.mxu0 %v645
    %1109 = vmatpush.msra.mxu0 %v641
    %1110 = vmatpush.msra.mxu0 %v637
    %1111 = vmatpush.msra.mxu0 %v633
    %1112 = vmatpush.msra.mxu0 %v629
    %1113 = vmatpush.msra.mxu0 %v625
    %1114 = vmatpush.msra.mxu0 %v621
    %1115 = vmatpush.msra.mxu0 %v617
    %1116 = vmatpush.msra.mxu0 %v613
    %1117 = vmatpush.msra.mxu0 %v609
    %1118 = vmatpush.msra.mxu0 %v605
    %1119 = vmatpush.msra.mxu0 %v601
    %1120 = vmatpush.msra.mxu0 %v597
    %1121 = vmatmul.f32.gmra.mxu0 %v123
    %v1122 = vpop.f32.mrf.mxu0
    %v1123 = vadd.f32 %v1094, %v1122
    %1124 = vmatmul.f32.gmra.mxu0 %v131
    %v1125 = vpop.f32.mrf.mxu0
    %v1126 = vadd.f32 %v1097, %v1125
    %1127 = vmatmul.f32.gmra.mxu0 %v139
    %v1128 = vpop.f32.mrf.mxu0
    %v1129 = vadd.f32 %v1100, %v1128
    %1130 = vmatmul.f32.gmra.mxu0 %v147
    %v1131 = vpop.f32.mrf.mxu0
    %v1132 = vadd.f32 %v1103, %v1131
    %1133 = vdwg.mxu0
    %1134 = vmatpush.msra.mxu0 %v210
    %1135 = vmatpush.msra.mxu0 %v206
    %1136 = vmatpush.msra.mxu0 %v202
    %1137 = vmatpush.msra.mxu0 %v198
    %1138 = vmatpush.msra.mxu0 %v194
    %1139 = vmatpush.msra.mxu0 %v190
    %1140 = vmatpush.msra.mxu0 %v186
    %1141 = vmatpush.msra.mxu0 %v182
    %1142 = vmatpush.msra.mxu0 %v178
    %1143 = vmatpush.msra.mxu0 %v174
    %1144 = vmatpush.msra.mxu0 %v170
    %1145 = vmatpush.msra.mxu0 %v166
    %1146 = vmatpush.msra.mxu0 %v162
    %1147 = vmatpush.msra.mxu0 %v158
    %1148 = vmatpush.msra.mxu0 %v154
    %1149 = vmatpush.msra.mxu0 %v150
    %1150 = vmatmul.f32.gmra.mxu0 %v116
    %v1151 = vpop.f32.mrf.mxu0
    %v1152 = vadd.f32 %v664, %v1151
    %1153 = vmatmul.f32.gmra.mxu0 %v124
    %v1154 = vpop.f32.mrf.mxu0
    %v1155 = vadd.f32 %v664, %v1154
    %1156 = vmatmul.f32.gmra.mxu0 %v132
    %v1157 = vpop.f32.mrf.mxu0
    %v1158 = vadd.f32 %v664, %v1157
    %1159 = vmatmul.f32.gmra.mxu0 %v140
    %v1160 = vpop.f32.mrf.mxu0
    %v1161 = vadd.f32 %v664, %v1160
    %1162 = vdwg.mxu0
    %1163 = vmatpush.msra.mxu0 %v274
    %1164 = vmatpush.msra.mxu0 %v270
    %1165 = vmatpush.msra.mxu0 %v266
    %1166 = vmatpush.msra.mxu0 %v262
    %1167 = vmatpush.msra.mxu0 %v258
    %1168 = vmatpush.msra.mxu0 %v254
    %1169 = vmatpush.msra.mxu0 %v250
    %1170 = vmatpush.msra.mxu0 %v246
    %1171 = vmatpush.msra.mxu0 %v242
    %1172 = vmatpush.msra.mxu0 %v238
    %1173 = vmatpush.msra.mxu0 %v234
    %1174 = vmatpush.msra.mxu0 %v230
    %1175 = vmatpush.msra.mxu0 %v226
    %1176 = vmatpush.msra.mxu0 %v222
    %1177 = vmatpush.msra.mxu0 %v218
    %1178 = vmatpush.msra.mxu0 %v214
    %1179 = vmatmul.f32.gmra.mxu0 %v117
    %v1180 = vpop.f32.mrf.mxu0
    %v1181 = vadd.f32 %v1152, %v1180
    %1182 = vmatmul.f32.gmra.mxu0 %v125
    %v1183 = vpop.f32.mrf.mxu0
    %v1184 = vadd.f32 %v1155, %v1183
    %1185 = vmatmul.f32.gmra.mxu0 %v133
    %v1186 = vpop.f32.mrf.mxu0
    %v1187 = vadd.f32 %v1158, %v1186
    %1188 = vmatmul.f32.gmra.mxu0 %v141
    %v1189 = vpop.f32.mrf.mxu0
    %v1190 = vadd.f32 %v1161, %v1189
    %1191 = vdwg.mxu0
    %1192 = vmatpush.msra.mxu0 %v338
    %1193 = vmatpush.msra.mxu0 %v334
    %1194 = vmatpush.msra.mxu0 %v330
    %1195 = vmatpush.msra.mxu0 %v326
    %1196 = vmatpush.msra.mxu0 %v322
    %1197 = vmatpush.msra.mxu0 %v318
    %1198 = vmatpush.msra.mxu0 %v314
    %1199 = vmatpush.msra.mxu0 %v310
    %1200 = vmatpush.msra.mxu0 %v306
    %1201 = vmatpush.msra.mxu0 %v302
    %1202 = vmatpush.msra.mxu0 %v298
    %1203 = vmatpush.msra.mxu0 %v294
    %1204 = vmatpush.msra.mxu0 %v290
    %1205 = vmatpush.msra.mxu0 %v286
    %1206 = vmatpush.msra.mxu0 %v282
    %1207 = vmatpush.msra.mxu0 %v278
    %1208 = vmatmul.f32.gmra.mxu0 %v118
    %v1209 = vpop.f32.mrf.mxu0
    %v1210 = vadd.f32 %v1181, %v1209
    %1211 = vmatmul.f32.gmra.mxu0 %v126
    %v1212 = vpop.f32.mrf.mxu0
    %v1213 = vadd.f32 %v1184, %v1212
    %1214 = vmatmul.f32.gmra.mxu0 %v134
    %v1215 = vpop.f32.mrf.mxu0
    %v1216 = vadd.f32 %v1187, %v1215
    %1217 = vmatmul.f32.gmra.mxu0 %v142
    %v1218 = vpop.f32.mrf.mxu0
    %v1219 = vadd.f32 %v1190, %v1218
    %1220 = vdwg.mxu0
    %1221 = vmatpush.msra.mxu0 %v402
    %1222 = vmatpush.msra.mxu0 %v398
    %1223 = vmatpush.msra.mxu0 %v394
    %1224 = vmatpush.msra.mxu0 %v390
    %1225 = vmatpush.msra.mxu0 %v386
    %1226 = vmatpush.msra.mxu0 %v382
    %1227 = vmatpush.msra.mxu0 %v378
    %1228 = vmatpush.msra.mxu0 %v374
    %1229 = vmatpush.msra.mxu0 %v370
    %1230 = vmatpush.msra.mxu0 %v366
    %1231 = vmatpush.msra.mxu0 %v362
    %1232 = vmatpush.msra.mxu0 %v358
    %1233 = vmatpush.msra.mxu0 %v354
    %1234 = vmatpush.msra.mxu0 %v350
    %1235 = vmatpush.msra.mxu0 %v346
    %1236 = vmatpush.msra.mxu0 %v342
    %1237 = vmatmul.f32.gmra.mxu0 %v119
    %v1238 = vpop.f32.mrf.mxu0
    %v1239 = vadd.f32 %v1210, %v1238
    %1240 = vmatmul.f32.gmra.mxu0 %v127
    %v1241 = vpop.f32.mrf.mxu0
    %v1242 = vadd.f32 %v1213, %v1241
    %1243 = vmatmul.f32.gmra.mxu0 %v135
    %v1244 = vpop.f32.mrf.mxu0
    %v1245 = vadd.f32 %v1216, %v1244
    %1246 = vmatmul.f32.gmra.mxu0 %v143
    %v1247 = vpop.f32.mrf.mxu0
    %v1248 = vadd.f32 %v1219, %v1247
    %1249 = vdwg.mxu0
    %1250 = vmatpush.msra.mxu0 %v466
    %1251 = vmatpush.msra.mxu0 %v462
    %1252 = vmatpush.msra.mxu0 %v458
    %1253 = vmatpush.msra.mxu0 %v454
    %1254 = vmatpush.msra.mxu0 %v450
    %1255 = vmatpush.msra.mxu0 %v446
    %1256 = vmatpush.msra.mxu0 %v442
    %1257 = vmatpush.msra.mxu0 %v438
    %1258 = vmatpush.msra.mxu0 %v434
    %1259 = vmatpush.msra.mxu0 %v430
    %1260 = vmatpush.msra.mxu0 %v426
    %1261 = vmatpush.msra.mxu0 %v422
    %1262 = vmatpush.msra.mxu0 %v418
    %1263 = vmatpush.msra.mxu0 %v414
    %1264 = vmatpush.msra.mxu0 %v410
    %1265 = vmatpush.msra.mxu0 %v406
    %1266 = vmatmul.f32.gmra.mxu0 %v120
    %v1267 = vpop.f32.mrf.mxu0
    %v1268 = vadd.f32 %v1239, %v1267
    %1269 = vmatmul.f32.gmra.mxu0 %v128
    %v1270 = vpop.f32.mrf.mxu0
    %v1271 = vadd.f32 %v1242, %v1270
    %1272 = vmatmul.f32.gmra.mxu0 %v136
    %v1273 = vpop.f32.mrf.mxu0
    %v1274 = vadd.f32 %v1245, %v1273
    %1275 = vmatmul.f32.gmra.mxu0 %v144
    %v1276 = vpop.f32.mrf.mxu0
    %v1277 = vadd.f32 %v1248, %v1276
    %1278 = vdwg.mxu0
    %1279 = vmatpush.msra.mxu0 %v530
    %1280 = vmatpush.msra.mxu0 %v526
    %1281 = vmatpush.msra.mxu0 %v522
    %1282 = vmatpush.msra.mxu0 %v518
    %1283 = vmatpush.msra.mxu0 %v514
    %1284 = vmatpush.msra.mxu0 %v510
    %1285 = vmatpush.msra.mxu0 %v506
    %1286 = vmatpush.msra.mxu0 %v502
    %1287 = vmatpush.msra.mxu0 %v498
    %1288 = vmatpush.msra.mxu0 %v494
    %1289 = vmatpush.msra.mxu0 %v490
    %1290 = vmatpush.msra.mxu0 %v486
    %1291 = vmatpush.msra.mxu0 %v482
    %1292 = vmatpush.msra.mxu0 %v478
    %1293 = vmatpush.msra.mxu0 %v474
    %1294 = vmatpush.msra.mxu0 %v470
    %1295 = vmatmul.f32.gmra.mxu0 %v121
    %v1296 = vpop.f32.mrf.mxu0
    %v1297 = vadd.f32 %v1268, %v1296
    %1298 = vmatmul.f32.gmra.mxu0 %v129
    %v1299 = vpop.f32.mrf.mxu0
    %v1300 = vadd.f32 %v1271, %v1299
    %1301 = vmatmul.f32.gmra.mxu0 %v137
    %v1302 = vpop.f32.mrf.mxu0
    %v1303 = vadd.f32 %v1274, %v1302
    %1304 = vmatmul.f32.gmra.mxu0 %v145
    %v1305 = vpop.f32.mrf.mxu0
    %v1306 = vadd.f32 %v1277, %v1305
    %1307 = vdwg.mxu0
    %1308 = vmatpush.msra.mxu0 %v594
    %1309 = vmatpush.msra.mxu0 %v590
    %1310 = vmatpush.msra.mxu0 %v586
    %1311 = vmatpush.msra.mxu0 %v582
    %1312 = vmatpush.msra.mxu0 %v578
    %1313 = vmatpush.msra.mxu0 %v574
    %1314 = vmatpush.msra.mxu0 %v570
    %1315 = vmatpush.msra.mxu0 %v566
    %1316 = vmatpush.msra.mxu0 %v562
    %1317 = vmatpush.msra.mxu0 %v558
    %1318 = vmatpush.msra.mxu0 %v554
    %1319 = vmatpush.msra.mxu0 %v550
    %1320 = vmatpush.msra.mxu0 %v546
    %1321 = vmatpush.msra.mxu0 %v542
    %1322 = vmatpush.msra.mxu0 %v538
    %1323 = vmatpush.msra.mxu0 %v534
    %1324 = vmatmul.f32.gmra.mxu0 %v122
    %v1325 = vpop.f32.mrf.mxu0
    %v1326 = vadd.f32 %v1297, %v1325
    %1327 = vmatmul.f32.gmra.mxu0 %v130
    %v1328 = vpop.f32.mrf.mxu0
    %v1329 = vadd.f32 %v1300, %v1328
    %1330 = vmatmul.f32.gmra.mxu0 %v138
    %v1331 = vpop.f32.mrf.mxu0
    %v1332 = vadd.f32 %v1303, %v1331
    %1333 = vmatmul.f32.gmra.mxu0 %v146
    %v1334 = vpop.f32.mrf.mxu0
    %v1335 = vadd.f32 %v1306, %v1334
    %1336 = vdwg.mxu0
    %1337 = vmatpush.msra.mxu0 %v658
    %1338 = vmatpush.msra.mxu0 %v654
    %1339 = vmatpush.msra.mxu0 %v650
    %1340 = vmatpush.msra.mxu0 %v646
    %1341 = vmatpush.msra.mxu0 %v642
    %1342 = vmatpush.msra.mxu0 %v638
    %1343 = vmatpush.msra.mxu0 %v634
    %1344 = vmatpush.msra.mxu0 %v630
    %1345 = vmatpush.msra.mxu0 %v626
    %1346 = vmatpush.msra.mxu0 %v622
    %1347 = vmatpush.msra.mxu0 %v618
    %1348 = vmatpush.msra.mxu0 %v614
    %1349 = vmatpush.msra.mxu0 %v610
    %1350 = vmatpush.msra.mxu0 %v606
    %1351 = vmatpush.msra.mxu0 %v602
    %1352 = vmatpush.msra.mxu0 %v598
    %1353 = vmatmul.f32.gmra.mxu0 %v123
    %v1354 = vpop.f32.mrf.mxu0
    %v1355 = vadd.f32 %v1326, %v1354
    %1356 = vmatmul.f32.gmra.mxu0 %v131
    %v1357 = vpop.f32.mrf.mxu0
    %v1358 = vadd.f32 %v1329, %v1357
    %1359 = vmatmul.f32.gmra.mxu0 %v139
    %v1360 = vpop.f32.mrf.mxu0
    %v1361 = vadd.f32 %v1332, %v1360
    %1362 = vmatmul.f32.gmra.mxu0 %v147
    %v1363 = vpop.f32.mrf.mxu0
    %v1364 = vadd.f32 %v1335, %v1363
    %1365 = vdwg.mxu0
    %1366 = vmatpush.msra.mxu0 %v211
    %1367 = vmatpush.msra.mxu0 %v207
    %1368 = vmatpush.msra.mxu0 %v203
    %1369 = vmatpush.msra.mxu0 %v199
    %1370 = vmatpush.msra.mxu0 %v195
    %1371 = vmatpush.msra.mxu0 %v191
    %1372 = vmatpush.msra.mxu0 %v187
    %1373 = vmatpush.msra.mxu0 %v183
    %1374 = vmatpush.msra.mxu0 %v179
    %1375 = vmatpush.msra.mxu0 %v175
    %1376 = vmatpush.msra.mxu0 %v171
    %1377 = vmatpush.msra.mxu0 %v167
    %1378 = vmatpush.msra.mxu0 %v163
    %1379 = vmatpush.msra.mxu0 %v159
    %1380 = vmatpush.msra.mxu0 %v155
    %1381 = vmatpush.msra.mxu0 %v151
    %1382 = vmatmul.f32.gmra.mxu0 %v116
    %v1383 = vpop.f32.mrf.mxu0
    %v1384 = vadd.f32 %v665, %v1383
    %1385 = vmatmul.f32.gmra.mxu0 %v124
    %v1386 = vpop.f32.mrf.mxu0
    %v1387 = vadd.f32 %v665, %v1386
    %1388 = vmatmul.f32.gmra.mxu0 %v132
    %v1389 = vpop.f32.mrf.mxu0
    %v1390 = vadd.f32 %v665, %v1389
    %1391 = vmatmul.f32.gmra.mxu0 %v140
    %v1392 = vpop.f32.mrf.mxu0
    %v1393 = vadd.f32 %v665, %v1392
    %1394 = vdwg.mxu0
    %1395 = vmatpush.msra.mxu0 %v275
    %1396 = vmatpush.msra.mxu0 %v271
    %1397 = vmatpush.msra.mxu0 %v267
    %1398 = vmatpush.msra.mxu0 %v263
    %1399 = vmatpush.msra.mxu0 %v259
    %1400 = vmatpush.msra.mxu0 %v255
    %1401 = vmatpush.msra.mxu0 %v251
    %1402 = vmatpush.msra.mxu0 %v247
    %1403 = vmatpush.msra.mxu0 %v243
    %1404 = vmatpush.msra.mxu0 %v239
    %1405 = vmatpush.msra.mxu0 %v235
    %1406 = vmatpush.msra.mxu0 %v231
    %1407 = vmatpush.msra.mxu0 %v227
    %1408 = vmatpush.msra.mxu0 %v223
    %1409 = vmatpush.msra.mxu0 %v219
    %1410 = vmatpush.msra.mxu0 %v215
    %1411 = vmatmul.f32.gmra.mxu0 %v117
    %v1412 = vpop.f32.mrf.mxu0
    %v1413 = vadd.f32 %v1384, %v1412
    %1414 = vmatmul.f32.gmra.mxu0 %v125
    %v1415 = vpop.f32.mrf.mxu0
    %v1416 = vadd.f32 %v1387, %v1415
    %1417 = vmatmul.f32.gmra.mxu0 %v133
    %v1418 = vpop.f32.mrf.mxu0
    %v1419 = vadd.f32 %v1390, %v1418
    %1420 = vmatmul.f32.gmra.mxu0 %v141
    %v1421 = vpop.f32.mrf.mxu0
    %v1422 = vadd.f32 %v1393, %v1421
    %1423 = vdwg.mxu0
    %1424 = vmatpush.msra.mxu0 %v339
    %1425 = vmatpush.msra.mxu0 %v335
    %1426 = vmatpush.msra.mxu0 %v331
    %1427 = vmatpush.msra.mxu0 %v327
    %1428 = vmatpush.msra.mxu0 %v323
    %1429 = vmatpush.msra.mxu0 %v319
    %1430 = vmatpush.msra.mxu0 %v315
    %1431 = vmatpush.msra.mxu0 %v311
    %1432 = vmatpush.msra.mxu0 %v307
    %1433 = vmatpush.msra.mxu0 %v303
    %1434 = vmatpush.msra.mxu0 %v299
    %1435 = vmatpush.msra.mxu0 %v295
    %1436 = vmatpush.msra.mxu0 %v291
    %1437 = vmatpush.msra.mxu0 %v287
    %1438 = vmatpush.msra.mxu0 %v283
    %1439 = vmatpush.msra.mxu0 %v279
    %1440 = vmatmul.f32.gmra.mxu0 %v118
    %v1441 = vpop.f32.mrf.mxu0
    %v1442 = vadd.f32 %v1413, %v1441
    %1443 = vmatmul.f32.gmra.mxu0 %v126
    %v1444 = vpop.f32.mrf.mxu0
    %v1445 = vadd.f32 %v1416, %v1444
    %1446 = vmatmul.f32.gmra.mxu0 %v134
    %v1447 = vpop.f32.mrf.mxu0
    %v1448 = vadd.f32 %v1419, %v1447
    %1449 = vmatmul.f32.gmra.mxu0 %v142
    %v1450 = vpop.f32.mrf.mxu0
    %v1451 = vadd.f32 %v1422, %v1450
    %1452 = vdwg.mxu0
    %1453 = vmatpush.msra.mxu0 %v403
    %1454 = vmatpush.msra.mxu0 %v399
    %1455 = vmatpush.msra.mxu0 %v395
    %1456 = vmatpush.msra.mxu0 %v391
    %1457 = vmatpush.msra.mxu0 %v387
    %1458 = vmatpush.msra.mxu0 %v383
    %1459 = vmatpush.msra.mxu0 %v379
    %1460 = vmatpush.msra.mxu0 %v375
    %1461 = vmatpush.msra.mxu0 %v371
    %1462 = vmatpush.msra.mxu0 %v367
    %1463 = vmatpush.msra.mxu0 %v363
    %1464 = vmatpush.msra.mxu0 %v359
    %1465 = vmatpush.msra.mxu0 %v355
    %1466 = vmatpush.msra.mxu0 %v351
    %1467 = vmatpush.msra.mxu0 %v347
    %1468 = vmatpush.msra.mxu0 %v343
    %1469 = vmatmul.f32.gmra.mxu0 %v119
    %v1470 = vpop.f32.mrf.mxu0
    %v1471 = vadd.f32 %v1442, %v1470
    %1472 = vmatmul.f32.gmra.mxu0 %v127
    %v1473 = vpop.f32.mrf.mxu0
    %v1474 = vadd.f32 %v1445, %v1473
    %1475 = vmatmul.f32.gmra.mxu0 %v135
    %v1476 = vpop.f32.mrf.mxu0
    %v1477 = vadd.f32 %v1448, %v1476
    %1478 = vmatmul.f32.gmra.mxu0 %v143
    %v1479 = vpop.f32.mrf.mxu0
    %v1480 = vadd.f32 %v1451, %v1479
    %1481 = vdwg.mxu0
    %1482 = vmatpush.msra.mxu0 %v467
    %1483 = vmatpush.msra.mxu0 %v463
    %1484 = vmatpush.msra.mxu0 %v459
    %1485 = vmatpush.msra.mxu0 %v455
    %1486 = vmatpush.msra.mxu0 %v451
    %1487 = vmatpush.msra.mxu0 %v447
    %1488 = vmatpush.msra.mxu0 %v443
    %1489 = vmatpush.msra.mxu0 %v439
    %1490 = vmatpush.msra.mxu0 %v435
    %1491 = vmatpush.msra.mxu0 %v431
    %1492 = vmatpush.msra.mxu0 %v427
    %1493 = vmatpush.msra.mxu0 %v423
    %1494 = vmatpush.msra.mxu0 %v419
    %1495 = vmatpush.msra.mxu0 %v415
    %1496 = vmatpush.msra.mxu0 %v411
    %1497 = vmatpush.msra.mxu0 %v407
    %1498 = vmatmul.f32.gmra.mxu0 %v120
    %v1499 = vpop.f32.mrf.mxu0
    %v1500 = vadd.f32 %v1471, %v1499
    %1501 = vmatmul.f32.gmra.mxu0 %v128
    %v1502 = vpop.f32.mrf.mxu0
    %v1503 = vadd.f32 %v1474, %v1502
    %1504 = vmatmul.f32.gmra.mxu0 %v136
    %v1505 = vpop.f32.mrf.mxu0
    %v1506 = vadd.f32 %v1477, %v1505
    %1507 = vmatmul.f32.gmra.mxu0 %v144
    %v1508 = vpop.f32.mrf.mxu0
    %v1509 = vadd.f32 %v1480, %v1508
    %1510 = vdwg.mxu0
    %1511 = vmatpush.msra.mxu0 %v531
    %1512 = vmatpush.msra.mxu0 %v527
    %1513 = vmatpush.msra.mxu0 %v523
    %1514 = vmatpush.msra.mxu0 %v519
    %1515 = vmatpush.msra.mxu0 %v515
    %1516 = vmatpush.msra.mxu0 %v511
    %1517 = vmatpush.msra.mxu0 %v507
    %1518 = vmatpush.msra.mxu0 %v503
    %1519 = vmatpush.msra.mxu0 %v499
    %1520 = vmatpush.msra.mxu0 %v495
    %1521 = vmatpush.msra.mxu0 %v491
    %1522 = vmatpush.msra.mxu0 %v487
    %1523 = vmatpush.msra.mxu0 %v483
    %1524 = vmatpush.msra.mxu0 %v479
    %1525 = vmatpush.msra.mxu0 %v475
    %1526 = vmatpush.msra.mxu0 %v471
    %1527 = vmatmul.f32.gmra.mxu0 %v121
    %v1528 = vpop.f32.mrf.mxu0
    %v1529 = vadd.f32 %v1500, %v1528
    %1530 = vmatmul.f32.gmra.mxu0 %v129
    %v1531 = vpop.f32.mrf.mxu0
    %v1532 = vadd.f32 %v1503, %v1531
    %1533 = vmatmul.f32.gmra.mxu0 %v137
    %v1534 = vpop.f32.mrf.mxu0
    %v1535 = vadd.f32 %v1506, %v1534
    %1536 = vmatmul.f32.gmra.mxu0 %v145
    %v1537 = vpop.f32.mrf.mxu0
    %v1538 = vadd.f32 %v1509, %v1537
    %1539 = vdwg.mxu0
    %1540 = vmatpush.msra.mxu0 %v595
    %1541 = vmatpush.msra.mxu0 %v591
    %1542 = vmatpush.msra.mxu0 %v587
    %1543 = vmatpush.msra.mxu0 %v583
    %1544 = vmatpush.msra.mxu0 %v579
    %1545 = vmatpush.msra.mxu0 %v575
    %1546 = vmatpush.msra.mxu0 %v571
    %1547 = vmatpush.msra.mxu0 %v567
    %1548 = vmatpush.msra.mxu0 %v563
    %1549 = vmatpush.msra.mxu0 %v559
    %1550 = vmatpush.msra.mxu0 %v555
    %1551 = vmatpush.msra.mxu0 %v551
    %1552 = vmatpush.msra.mxu0 %v547
    %1553 = vmatpush.msra.mxu0 %v543
    %1554 = vmatpush.msra.mxu0 %v539
    %1555 = vmatpush.msra.mxu0 %v535
    %1556 = vmatmul.f32.gmra.mxu0 %v122
    %v1557 = vpop.f32.mrf.mxu0
    %v1558 = vadd.f32 %v1529, %v1557
    %1559 = vmatmul.f32.gmra.mxu0 %v130
    %v1560 = vpop.f32.mrf.mxu0
    %v1561 = vadd.f32 %v1532, %v1560
    %1562 = vmatmul.f32.gmra.mxu0 %v138
    %v1563 = vpop.f32.mrf.mxu0
    %v1564 = vadd.f32 %v1535, %v1563
    %1565 = vmatmul.f32.gmra.mxu0 %v146
    %v1566 = vpop.f32.mrf.mxu0
    %v1567 = vadd.f32 %v1538, %v1566
    %1568 = vdwg.mxu0
    %1569 = vmatpush.msra.mxu0 %v659
    %1570 = vmatpush.msra.mxu0 %v655
    %1571 = vmatpush.msra.mxu0 %v651
    %1572 = vmatpush.msra.mxu0 %v647
    %1573 = vmatpush.msra.mxu0 %v643
    %1574 = vmatpush.msra.mxu0 %v639
    %1575 = vmatpush.msra.mxu0 %v635
    %1576 = vmatpush.msra.mxu0 %v631
    %1577 = vmatpush.msra.mxu0 %v627
    %1578 = vmatpush.msra.mxu0 %v623
    %1579 = vmatpush.msra.mxu0 %v619
    %1580 = vmatpush.msra.mxu0 %v615
    %1581 = vmatpush.msra.mxu0 %v611
    %1582 = vmatpush.msra.mxu0 %v607
    %1583 = vmatpush.msra.mxu0 %v603
    %1584 = vmatpush.msra.mxu0 %v599
    %1585 = vmatmul.f32.gmra.mxu0 %v123
    %v1586 = vpop.f32.mrf.mxu0
    %v1587 = vadd.f32 %v1558, %v1586
    %1588 = vmatmul.f32.gmra.mxu0 %v131
    %v1589 = vpop.f32.mrf.mxu0
    %v1590 = vadd.f32 %v1561, %v1589
    %1591 = vmatmul.f32.gmra.mxu0 %v139
    %v1592 = vpop.f32.mrf.mxu0
    %v1593 = vadd.f32 %v1564, %v1592
    %1594 = vmatmul.f32.gmra.mxu0 %v147
    %v1595 = vpop.f32.mrf.mxu0
    %v1596 = vadd.f32 %v1567, %v1595
    %1597 = vdwg.mxu0
    %v1598 = vmax.f32 %v891, 0.0
    %v1599 = vmax.f32 %v1123, 0.0
    %v1600 = vmax.f32 %v1355, 0.0
    %v1601 = vmax.f32 %v1587, 0.0
    %v1602 = vmax.f32 %v894, 0.0
    %v1603 = vmax.f32 %v1126, 0.0
    %v1604 = vmax.f32 %v1358, 0.0
    %v1605 = vmax.f32 %v1590, 0.0
    %v1606 = vmax.f32 %v897, 0.0
    %v1607 = vmax.f32 %v1129, 0.0
    %v1608 = vmax.f32 %v1361, 0.0
    %v1609 = vmax.f32 %v1593, 0.0
    %v1610 = vmax.f32 %v900, 0.0
    %v1611 = vmax.f32 %v1132, 0.0
    %v1612 = vmax.f32 %v1364, 0.0
    %v1613 = vmax.f32 %v1596, 0.0
    %v1614 = vadd.f32 %v1598, %v1602
    %v1615 = vrot.slane %v1614, 4
    %v1616 = vadd.f32 %v1614, %v1615
    %v1617 = vrot.slane %v1616, 2
    %v1618 = vadd.f32 %v1616, %v1617
    %v1619 = vrot.slane %v1618, 1
    %v1620 = vadd.f32 %v1618, %v1619
    %v1621 = vadd.f32 %v1599, %v1603
    %v1622 = vrot.slane %v1621, 4
    %v1623 = vadd.f32 %v1621, %v1622
    %v1624 = vrot.slane %v1623, 2
    %v1625 = vadd.f32 %v1623, %v1624
    %v1626 = vrot.slane %v1625, 1
    %v1627 = vadd.f32 %v1625, %v1626
    %v1628 = vadd.f32 %v1600, %v1604
    %v1629 = vrot.slane %v1628, 4
    %v1630 = vadd.f32 %v1628, %v1629
    %v1631 = vrot.slane %v1630, 2
    %v1632 = vadd.f32 %v1630, %v1631
    %v1633 = vrot.slane %v1632, 1
    %v1634 = vadd.f32 %v1632, %v1633
    %v1635 = vadd.f32 %v1601, %v1605
    %v1636 = vrot.slane %v1635, 4
    %v1637 = vadd.f32 %v1635, %v1636
    %v1638 = vrot.slane %v1637, 2
    %v1639 = vadd.f32 %v1637, %v1638
    %v1640 = vrot.slane %v1639, 1
    %v1641 = vadd.f32 %v1639, %v1640
    %v1642 = vadd.f32 %v1606, %v1610
    %v1643 = vrot.slane %v1642, 4
    %v1644 = vadd.f32 %v1642, %v1643
    %v1645 = vrot.slane %v1644, 2
    %v1646 = vadd.f32 %v1644, %v1645
    %v1647 = vrot.slane %v1646, 1
    %v1648 = vadd.f32 %v1646, %v1647
    %v1649 = vadd.f32 %v1607, %v1611
    %v1650 = vrot.slane %v1649, 4
    %v1651 = vadd.f32 %v1649, %v1650
    %v1652 = vrot.slane %v1651, 2
    %v1653 = vadd.f32 %v1651, %v1652
    %v1654 = vrot.slane %v1653, 1
    %v1655 = vadd.f32 %v1653, %v1654
    %v1656 = vadd.f32 %v1608, %v1612
    %v1657 = vrot.slane %v1656, 4
    %v1658 = vadd.f32 %v1656, %v1657
    %v1659 = vrot.slane %v1658, 2
    %v1660 = vadd.f32 %v1658, %v1659
    %v1661 = vrot.slane %v1660, 1
    %v1662 = vadd.f32 %v1660, %v1661
    %v1663 = vadd.f32 %v1609, %v1613
    %v1664 = vrot.slane %v1663, 4
    %v1665 = vadd.f32 %v1663, %v1664
    %v1666 = vrot.slane %v1665, 2
    %v1667 = vadd.f32 %v1665, %v1666
    %v1668 = vrot.slane %v1667, 1
    %v1669 = vadd.f32 %v1667, %v1668
    %v1670 = vld [vmem:[#allocation7] sm:$0xff]
    %v1671 = vld [vmem:[#allocation7 + $0x8] sm:$0xff]
    %v1672 = vld [vmem:[#allocation7 + $0x10] sm:$0xff]
    %v1673 = vld [vmem:[#allocation7 + $0x18] sm:$0xff]
    %v1674 = vld [vmem:[#allocation7 + $0x20] sm:$0xff]
    %v1675 = vld [vmem:[#allocation7 + $0x28] sm:$0xff]
    %v1676 = vld [vmem:[#allocation7 + $0x30] sm:$0xff]
    %v1677 = vld [vmem:[#allocation7 + $0x38] sm:$0xff]
    %v1678 = vld [vmem:[#allocation7 + $0x40] sm:$0xff]
    %v1679 = vld [vmem:[#allocation7 + $0x48] sm:$0xff]
    %v1680 = vld [vmem:[#allocation7 + $0x50] sm:$0xff]
    %v1681 = vld [vmem:[#allocation7 + $0x58] sm:$0xff]
    %v1682 = vld [vmem:[#allocation7 + $0x60] sm:$0xff]
    %v1683 = vld [vmem:[#allocation7 + $0x68] sm:$0xff]
    %v1684 = vld [vmem:[#allocation7 + $0x70] sm:$0xff]
    %v1685 = vld [vmem:[#allocation7 + $0x78] sm:$0xff]
    %v1686 = vld [vmem:[#allocation7 + $0x80] sm:$0xff]
    %v1687 = vld [vmem:[#allocation7 + $0x88] sm:$0xff]
    %v1688 = vld [vmem:[#allocation7 + $0x90] sm:$0xff]
    %v1689 = vld [vmem:[#allocation7 + $0x98] sm:$0xff]
    %v1690 = vld [vmem:[#allocation7 + $0xa0] sm:$0xff]
    %v1691 = vld [vmem:[#allocation7 + $0xa8] sm:$0xff]
    %v1692 = vld [vmem:[#allocation7 + $0xb0] sm:$0xff]
    %v1693 = vld [vmem:[#allocation7 + $0xb8] sm:$0xff]
    %v1694 = vld [vmem:[#allocation7 + $0xc0] sm:$0xff]
    %v1695 = vld [vmem:[#allocation7 + $0xc8] sm:$0xff]
    %v1696 = vld [vmem:[#allocation7 + $0xd0] sm:$0xff]
    %v1697 = vld [vmem:[#allocation7 + $0xd8] sm:$0xff]
    %v1698 = vld [vmem:[#allocation7 + $0xe0] sm:$0xff]
    %v1699 = vld [vmem:[#allocation7 + $0xe8] sm:$0xff]
    %v1700 = vld [vmem:[#allocation7 + $0xf0] sm:$0xff]
    %v1701 = vld [vmem:[#allocation7 + $0xf8] sm:$0xff]
    %v1702 = vld [vmem:[#allocation7 + $0x100] sm:$0xff]
    %v1703 = vld [vmem:[#allocation7 + $0x108] sm:$0xff]
    %v1704 = vld [vmem:[#allocation7 + $0x110] sm:$0xff]
    %v1705 = vld [vmem:[#allocation7 + $0x118] sm:$0xff]
    %v1706 = vld [vmem:[#allocation7 + $0x120] sm:$0xff]
    %v1707 = vld [vmem:[#allocation7 + $0x128] sm:$0xff]
    %v1708 = vld [vmem:[#allocation7 + $0x130] sm:$0xff]
    %v1709 = vld [vmem:[#allocation7 + $0x138] sm:$0xff]
    %v1710 = vld [vmem:[#allocation7 + $0x140] sm:$0xff]
    %v1711 = vld [vmem:[#allocation7 + $0x148] sm:$0xff]
    %v1712 = vld [vmem:[#allocation7 + $0x150] sm:$0xff]
    %v1713 = vld [vmem:[#allocation7 + $0x158] sm:$0xff]
    %v1714 = vld [vmem:[#allocation7 + $0x160] sm:$0xff]
    %v1715 = vld [vmem:[#allocation7 + $0x168] sm:$0xff]
    %v1716 = vld [vmem:[#allocation7 + $0x170] sm:$0xff]
    %v1717 = vld [vmem:[#allocation7 + $0x178] sm:$0xff]
    %v1718 = vld [vmem:[#allocation7 + $0x180] sm:$0xff]
    %v1719 = vld [vmem:[#allocation7 + $0x188] sm:$0xff]
    %v1720 = vld [vmem:[#allocation7 + $0x190] sm:$0xff]
    %v1721 = vld [vmem:[#allocation7 + $0x198] sm:$0xff]
    %v1722 = vld [vmem:[#allocation7 + $0x1a0] sm:$0xff]
    %v1723 = vld [vmem:[#allocation7 + $0x1a8] sm:$0xff]
    %v1724 = vld [vmem:[#allocation7 + $0x1b0] sm:$0xff]
    %v1725 = vld [vmem:[#allocation7 + $0x1b8] sm:$0xff]
    %v1726 = vld [vmem:[#allocation7 + $0x1c0] sm:$0xff]
    %v1727 = vld [vmem:[#allocation7 + $0x1c8] sm:$0xff]
    %v1728 = vld [vmem:[#allocation7 + $0x1d0] sm:$0xff]
    %v1729 = vld [vmem:[#allocation7 + $0x1d8] sm:$0xff]
    %v1730 = vld [vmem:[#allocation7 + $0x1e0] sm:$0xff]
    %v1731 = vld [vmem:[#allocation7 + $0x1e8] sm:$0xff]
    %v1732 = vld [vmem:[#allocation7 + $0x1f0] sm:$0xff]
    %v1733 = vld [vmem:[#allocation7 + $0x1f8] sm:$0xff]
    %v1734 = vld [vmem:[#allocation7 + $0x200] sm:$0xff]
    %v1735 = vld [vmem:[#allocation7 + $0x208] sm:$0xff]
    %v1736 = vld [vmem:[#allocation7 + $0x210] sm:$0xff]
    %v1737 = vld [vmem:[#allocation7 + $0x218] sm:$0xff]
    %v1738 = vld [vmem:[#allocation7 + $0x220] sm:$0xff]
    %v1739 = vld [vmem:[#allocation7 + $0x228] sm:$0xff]
    %v1740 = vld [vmem:[#allocation7 + $0x230] sm:$0xff]
    %v1741 = vld [vmem:[#allocation7 + $0x238] sm:$0xff]
    %v1742 = vld [vmem:[#allocation7 + $0x240] sm:$0xff]
    %v1743 = vld [vmem:[#allocation7 + $0x248] sm:$0xff]
    %v1744 = vld [vmem:[#allocation7 + $0x250] sm:$0xff]
    %v1745 = vld [vmem:[#allocation7 + $0x258] sm:$0xff]
    %v1746 = vld [vmem:[#allocation7 + $0x260] sm:$0xff]
    %v1747 = vld [vmem:[#allocation7 + $0x268] sm:$0xff]
    %v1748 = vld [vmem:[#allocation7 + $0x270] sm:$0xff]
    %v1749 = vld [vmem:[#allocation7 + $0x278] sm:$0xff]
    %v1750 = vld [vmem:[#allocation7 + $0x280] sm:$0xff]
    %v1751 = vld [vmem:[#allocation7 + $0x288] sm:$0xff]
    %v1752 = vld [vmem:[#allocation7 + $0x290] sm:$0xff]
    %v1753 = vld [vmem:[#allocation7 + $0x298] sm:$0xff]
    %v1754 = vld [vmem:[#allocation7 + $0x2a0] sm:$0xff]
    %v1755 = vld [vmem:[#allocation7 + $0x2a8] sm:$0xff]
    %v1756 = vld [vmem:[#allocation7 + $0x2b0] sm:$0xff]
    %v1757 = vld [vmem:[#allocation7 + $0x2b8] sm:$0xff]
    %v1758 = vld [vmem:[#allocation7 + $0x2c0] sm:$0xff]
    %v1759 = vld [vmem:[#allocation7 + $0x2c8] sm:$0xff]
    %v1760 = vld [vmem:[#allocation7 + $0x2d0] sm:$0xff]
    %v1761 = vld [vmem:[#allocation7 + $0x2d8] sm:$0xff]
    %v1762 = vld [vmem:[#allocation7 + $0x2e0] sm:$0xff]
    %v1763 = vld [vmem:[#allocation7 + $0x2e8] sm:$0xff]
    %v1764 = vld [vmem:[#allocation7 + $0x2f0] sm:$0xff]
    %v1765 = vld [vmem:[#allocation7 + $0x2f8] sm:$0xff]
    %v1766 = vld [vmem:[#allocation7 + $0x300] sm:$0xff]
    %v1767 = vld [vmem:[#allocation7 + $0x308] sm:$0xff]
    %v1768 = vld [vmem:[#allocation7 + $0x310] sm:$0xff]
    %v1769 = vld [vmem:[#allocation7 + $0x318] sm:$0xff]
    %v1770 = vld [vmem:[#allocation7 + $0x320] sm:$0xff]
    %v1771 = vld [vmem:[#allocation7 + $0x328] sm:$0xff]
    %v1772 = vld [vmem:[#allocation7 + $0x330] sm:$0xff]
    %v1773 = vld [vmem:[#allocation7 + $0x338] sm:$0xff]
    %v1774 = vld [vmem:[#allocation7 + $0x340] sm:$0xff]
    %v1775 = vld [vmem:[#allocation7 + $0x348] sm:$0xff]
    %v1776 = vld [vmem:[#allocation7 + $0x350] sm:$0xff]
    %v1777 = vld [vmem:[#allocation7 + $0x358] sm:$0xff]
    %v1778 = vld [vmem:[#allocation7 + $0x360] sm:$0xff]
    %v1779 = vld [vmem:[#allocation7 + $0x368] sm:$0xff]
    %v1780 = vld [vmem:[#allocation7 + $0x370] sm:$0xff]
    %v1781 = vld [vmem:[#allocation7 + $0x378] sm:$0xff]
    %v1782 = vld [vmem:[#allocation7 + $0x380] sm:$0xff]
    %v1783 = vld [vmem:[#allocation7 + $0x388] sm:$0xff]
    %v1784 = vld [vmem:[#allocation7 + $0x390] sm:$0xff]
    %v1785 = vld [vmem:[#allocation7 + $0x398] sm:$0xff]
    %v1786 = vld [vmem:[#allocation7 + $0x3a0] sm:$0xff]
    %v1787 = vld [vmem:[#allocation7 + $0x3a8] sm:$0xff]
    %v1788 = vld [vmem:[#allocation7 + $0x3b0] sm:$0xff]
    %v1789 = vld [vmem:[#allocation7 + $0x3b8] sm:$0xff]
    %v1790 = vld [vmem:[#allocation7 + $0x3c0] sm:$0xff]
    %v1791 = vld [vmem:[#allocation7 + $0x3c8] sm:$0xff]
    %v1792 = vld [vmem:[#allocation7 + $0x3d0] sm:$0xff]
    %v1793 = vld [vmem:[#allocation7 + $0x3d8] sm:$0xff]
    %v1794 = vld [vmem:[#allocation7 + $0x3e0] sm:$0xff]
    %v1795 = vld [vmem:[#allocation7 + $0x3e8] sm:$0xff]
    %v1796 = vld [vmem:[#allocation7 + $0x3f0] sm:$0xff]
    %v1797 = vld [vmem:[#allocation7 + $0x3f8] sm:$0xff]
    %v1798 = vld [vmem:[#allocation9] sm:$0x3]
    %v1800 = vperm.slane %v1798, 0
    %v1801 = vperm.slane %v1798, 1
    %vm1812 = vcmask 1041409
    %v1813 = vsel %vm1812, %v1648, %v1620
    %v1814 = vsel %vm1812, %v1655, %v1627
    %v1815 = vsel %vm1812, %v1662, %v1634
    %v1816 = vsel %vm1812, %v1669, %v1641
    %1821 = vmatpush.msra.mxu0 %v1700
    %1822 = vmatpush.msra.mxu0 %v1698
    %1823 = vmatpush.msra.mxu0 %v1696
    %1824 = vmatpush.msra.mxu0 %v1694
    %1825 = vmatpush.msra.mxu0 %v1692
    %1826 = vmatpush.msra.mxu0 %v1690
    %1827 = vmatpush.msra.mxu0 %v1688
    %1828 = vmatpush.msra.mxu0 %v1686
    %1829 = vmatpush.msra.mxu0 %v1684
    %1830 = vmatpush.msra.mxu0 %v1682
    %1831 = vmatpush.msra.mxu0 %v1680
    %1832 = vmatpush.msra.mxu0 %v1678
    %1833 = vmatpush.msra.mxu0 %v1676
    %1834 = vmatpush.msra.mxu0 %v1674
    %1835 = vmatpush.msra.mxu0 %v1672
    %1836 = vmatpush.msra.mxu0 %v1670
    %1837 = vmatmul.f32.gmra.mxu0 %v1813
    %v1838 = vpop.f32.mrf.mxu0
    %v1839 = vadd.f32 %v1800, %v1838
    %1840 = vdwg.mxu0
    %1841 = vmatpush.msra.mxu0 %v1732
    %1842 = vmatpush.msra.mxu0 %v1730
    %1843 = vmatpush.msra.mxu0 %v1728
    %1844 = vmatpush.msra.mxu0 %v1726
    %1845 = vmatpush.msra.mxu0 %v1724
    %1846 = vmatpush.msra.mxu0 %v1722
    %1847 = vmatpush.msra.mxu0 %v1720
    %1848 = vmatpush.msra.mxu0 %v1718
    %1849 = vmatpush.msra.mxu0 %v1716
    %1850 = vmatpush.msra.mxu0 %v1714
    %1851 = vmatpush.msra.mxu0 %v1712
    %1852 = vmatpush.msra.mxu0 %v1710
    %1853 = vmatpush.msra.mxu0 %v1708
    %1854 = vmatpush.msra.mxu0 %v1706
    %1855 = vmatpush.msra.mxu0 %v1704
    %1856 = vmatpush.msra.mxu0 %v1702
    %1857 = vmatmul.f32.gmra.mxu0 %v1814
    %v1858 = vpop.f32.mrf.mxu0
    %v1859 = vadd.f32 %v1839, %v1858
    %1860 = vdwg.mxu0
    %1861 = vmatpush.msra.mxu0 %v1764
    %1862 = vmatpush.msra.mxu0 %v1762
    %1863 = vmatpush.msra.mxu0 %v1760
    %1864 = vmatpush.msra.mxu0 %v1758
    %1865 = vmatpush.msra.mxu0 %v1756
    %1866 = vmatpush.msra.mxu0 %v1754
    %1867 = vmatpush.msra.mxu0 %v1752
    %1868 = vmatpush.msra.mxu0 %v1750
    %1869 = vmatpush.msra.mxu0 %v1748
    %1870 = vmatpush.msra.mxu0 %v1746
    %1871 = vmatpush.msra.mxu0 %v1744
    %1872 = vmatpush.msra.mxu0 %v1742
    %1873 = vmatpush.msra.mxu0 %v1740
    %1874 = vmatpush.msra.mxu0 %v1738
    %1875 = vmatpush.msra.mxu0 %v1736
    %1876 = vmatpush.msra.mxu0 %v1734
    %1877 = vmatmul.f32.gmra.mxu0 %v1815
    %v1878 = vpop.f32.mrf.mxu0
    %v1879 = vadd.f32 %v1859, %v1878
    %1880 = vdwg.mxu0
    %1881 = vmatpush.msra.mxu0 %v1796
    %1882 = vmatpush.msra.mxu0 %v1794
    %1883 = vmatpush.msra.mxu0 %v1792
    %1884 = vmatpush.msra.mxu0 %v1790
    %1885 = vmatpush.msra.mxu0 %v1788
    %1886 = vmatpush.msra.mxu0 %v1786
    %1887 = vmatpush.msra.mxu0 %v1784
    %1888 = vmatpush.msra.mxu0 %v1782
    %1889 = vmatpush.msra.mxu0 %v1780
    %1890 = vmatpush.msra.mxu0 %v1778
    %1891 = vmatpush.msra.mxu0 %v1776
    %1892 = vmatpush.msra.mxu0 %v1774
    %1893 = vmatpush.msra.mxu0 %v1772
    %1894 = vmatpush.msra.mxu0 %v1770
    %1895 = vmatpush.msra.mxu0 %v1768
    %1896 = vmatpush.msra.mxu0 %v1766
    %1897 = vmatmul.f32.gmra.mxu0 %v1816
    %v1898 = vpop.f32.mrf.mxu0
    %v1899 = vadd.f32 %v1879, %v1898
    %1900 = vdwg.mxu0
    %1901 = vmatpush.msra.mxu0 %v1701
    %1902 = vmatpush.msra.mxu0 %v1699
    %1903 = vmatpush.msra.mxu0 %v1697
    %1904 = vmatpush.msra.mxu0 %v1695
    %1905 = vmatpush.msra.mxu0 %v1693
    %1906 = vmatpush.msra.mxu0 %v1691
    %1907 = vmatpush.msra.mxu0 %v1689
    %1908 = vmatpush.msra.mxu0 %v1687
    %1909 = vmatpush.msra.mxu0 %v1685
    %1910 = vmatpush.msra.mxu0 %v1683
    %1911 = vmatpush.msra.mxu0 %v1681
    %1912 = vmatpush.msra.mxu0 %v1679
    %1913 = vmatpush.msra.mxu0 %v1677
    %1914 = vmatpush.msra.mxu0 %v1675
    %1915 = vmatpush.msra.mxu0 %v1673
    %1916 = vmatpush.msra.mxu0 %v1671
    %1917 = vmatmul.f32.gmra.mxu0 %v1813
    %v1918 = vpop.f32.mrf.mxu0
    %v1919 = vadd.f32 %v1801, %v1918
    %1920 = vdwg.mxu0
    %1921 = vmatpush.msra.mxu0 %v1733
    %1922 = vmatpush.msra.mxu0 %v1731
    %1923 = vmatpush.msra.mxu0 %v1729
    %1924 = vmatpush.msra.mxu0 %v1727
    %1925 = vmatpush.msra.mxu0 %v1725
    %1926 = vmatpush.msra.mxu0 %v1723
    %1927 = vmatpush.msra.mxu0 %v1721
    %1928 = vmatpush.msra.mxu0 %v1719
    %1929 = vmatpush.msra.mxu0 %v1717
    %1930 = vmatpush.msra.mxu0 %v1715
    %1931 = vmatpush.msra.mxu0 %v1713
    %1932 = vmatpush.msra.mxu0 %v1711
    %1933 = vmatpush.msra.mxu0 %v1709
    %1934 = vmatpush.msra.mxu0 %v1707
    %1935 = vmatpush.msra.mxu0 %v1705
    %1936 = vmatpush.msra.mxu0 %v1703
    %1937 = vmatmul.f32.gmra.mxu0 %v1814
    %v1938 = vpop.f32.mrf.mxu0
    %v1939 = vadd.f32 %v1919, %v1938
    %1940 = vdwg.mxu0
    %1941 = vmatpush.msra.mxu0 %v1765
    %1942 = vmatpush.msra.mxu0 %v1763
    %1943 = vmatpush.msra.mxu0 %v1761
    %1944 = vmatpush.msra.mxu0 %v1759
    %1945 = vmatpush.msra.mxu0 %v1757
    %1946 = vmatpush.msra.mxu0 %v1755
    %1947 = vmatpush.msra.mxu0 %v1753
    %1948 = vmatpush.msra.mxu0 %v1751
    %1949 = vmatpush.msra.mxu0 %v1749
    %1950 = vmatpush.msra.mxu0 %v1747
    %1951 = vmatpush.msra.mxu0 %v1745
    %1952 = vmatpush.msra.mxu0 %v1743
    %1953 = vmatpush.msra.mxu0 %v1741
    %1954 = vmatpush.msra.mxu0 %v1739
    %1955 = vmatpush.msra.mxu0 %v1737
    %1956 = vmatpush.msra.mxu0 %v1735
    %1957 = vmatmul.f32.gmra.mxu0 %v1815
    %v1958 = vpop.f32.mrf.mxu0
    %v1959 = vadd.f32 %v1939, %v1958
    %1960 = vdwg.mxu0
    %1961 = vmatpush.msra.mxu0 %v1797
    %1962 = vmatpush.msra.mxu0 %v1795
    %1963 = vmatpush.msra.mxu0 %v1793
    %1964 = vmatpush.msra.mxu0 %v1791
    %1965 = vmatpush.msra.mxu0 %v1789
    %1966 = vmatpush.msra.mxu0 %v1787
    %1967 = vmatpush.msra.mxu0 %v1785
    %1968 = vmatpush.msra.mxu0 %v1783
    %1969 = vmatpush.msra.mxu0 %v1781
    %1970 = vmatpush.msra.mxu0 %v1779
    %1971 = vmatpush.msra.mxu0 %v1777
    %1972 = vmatpush.msra.mxu0 %v1775
    %1973 = vmatpush.msra.mxu0 %v1773
    %1974 = vmatpush.msra.mxu0 %v1771
    %1975 = vmatpush.msra.mxu0 %v1769
    %1976 = vmatpush.msra.mxu0 %v1767
    %1977 = vmatmul.f32.gmra.mxu0 %v1816
    %v1978 = vpop.f32.mrf.mxu0
    %v1979 = vadd.f32 %v1959, %v1978
    %1980 = vdwg.mxu0
    %v1981 = vmax.f32 %v1899, 0.0
    %v1982 = vmax.f32 %v1979, 0.0
    %v1983 = vld [vmem:[%s5] sm:$0xff]
    %v1984 = vld [vmem:[%s5 + $0x8] sm:$0xff]
    %v1985 = vld [vmem:[%s5 + $0x10] sm:$0xff]
    %v1986 = vld [vmem:[%s5 + $0x18] sm:$0xff]
    %v1987 = vld [vmem:[%s5 + $0x20] sm:$0xff]
    %v1988 = vld [vmem:[%s5 + $0x28] sm:$0xff]
    %v1989 = vld [vmem:[%s5 + $0x30] sm:$0xff]
    %v1990 = vld [vmem:[%s5 + $0x38] sm:$0xff]
    %v1991 = vld [vmem:[%s5 + $0x40] sm:$0xff]
    %v1992 = vld [vmem:[%s5 + $0x48] sm:$0xff]
    %v1993 = vld [vmem:[%s5 + $0x50] sm:$0xff]
    %v1994 = vld [vmem:[%s5 + $0x58] sm:$0xff]
    %v1995 = vld [vmem:[%s5 + $0x60] sm:$0xff]
    %v1996 = vld [vmem:[%s5 + $0x68] sm:$0xff]
    %v1997 = vld [vmem:[%s5 + $0x70] sm:$0xff]
    %v1998 = vld [vmem:[%s5 + $0x78] sm:$0xff]
    %v1999 = vld [vmem:[%s5 + $0x80] sm:$0xff]
    %v2000 = vld [vmem:[%s5 + $0x88] sm:$0xff]
    %v2001 = vld [vmem:[%s5 + $0x90] sm:$0xff]
    %v2002 = vld [vmem:[%s5 + $0x98] sm:$0xff]
    %v2003 = vld [vmem:[%s5 + $0xa0] sm:$0xff]
    %v2004 = vld [vmem:[%s5 + $0xa8] sm:$0xff]
    %v2005 = vld [vmem:[%s5 + $0xb0] sm:$0xff]
    %v2006 = vld [vmem:[%s5 + $0xb8] sm:$0xff]
    %v2007 = vld [vmem:[%s5 + $0xc0] sm:$0xff]
    %v2008 = vld [vmem:[%s5 + $0xc8] sm:$0xff]
    %v2009 = vld [vmem:[%s5 + $0xd0] sm:$0xff]
    %v2010 = vld [vmem:[%s5 + $0xd8] sm:$0xff]
    %v2011 = vld [vmem:[%s5 + $0xe0] sm:$0xff]
    %v2012 = vld [vmem:[%s5 + $0xe8] sm:$0xff]
    %v2013 = vld [vmem:[%s5 + $0xf0] sm:$0xff]
    %v2014 = vld [vmem:[%s5 + $0xf8] sm:$0xff]
    %v2015 = vld [vmem:[#allocation10] sm:$0x1]
    %v2017 = vperm.slane %v2015, 0
    %2019 = vmatpush.msra.mxu0 %v1998
    %2020 = vmatpush.msra.mxu0 %v1997
    %2021 = vmatpush.msra.mxu0 %v1996
    %2022 = vmatpush.msra.mxu0 %v1995
    %2023 = vmatpush.msra.mxu0 %v1994
    %2024 = vmatpush.msra.mxu0 %v1993
    %2025 = vmatpush.msra.mxu0 %v1992
    %2026 = vmatpush.msra.mxu0 %v1991
    %2027 = vmatpush.msra.mxu0 %v1990
    %2028 = vmatpush.msra.mxu0 %v1989
    %2029 = vmatpush.msra.mxu0 %v1988
    %2030 = vmatpush.msra.mxu0 %v1987
    %2031 = vmatpush.msra.mxu0 %v1986
    %2032 = vmatpush.msra.mxu0 %v1985
    %2033 = vmatpush.msra.mxu0 %v1984
    %2034 = vmatpush.msra.mxu0 %v1983
    %2035 = vmatmul.f32.gmra.mxu0 %v1981
    %v2036 = vpop.f32.mrf.mxu0
    %v2037 = vadd.f32 %v2017, %v2036
    %2038 = vdwg.mxu0
    %2039 = vmatpush.msra.mxu0 %v2014
    %2040 = vmatpush.msra.mxu0 %v2013
    %2041 = vmatpush.msra.mxu0 %v2012
    %2042 = vmatpush.msra.mxu0 %v2011
    %2043 = vmatpush.msra.mxu0 %v2010
    %2044 = vmatpush.msra.mxu0 %v2009
    %2045 = vmatpush.msra.mxu0 %v2008
    %2046 = vmatpush.msra.mxu0 %v2007
    %2047 = vmatpush.msra.mxu0 %v2006
    %2048 = vmatpush.msra.mxu0 %v2005
    %2049 = vmatpush.msra.mxu0 %v2004
    %2050 = vmatpush.msra.mxu0 %v2003
    %2051 = vmatpush.msra.mxu0 %v2002
    %2052 = vmatpush.msra.mxu0 %v2001
    %2053 = vmatpush.msra.mxu0 %v2000
    %2054 = vmatpush.msra.mxu0 %v1999
    %2055 = vmatmul.f32.gmra.mxu0 %v1982
    %v2056 = vpop.f32.mrf.mxu0
    %v2057 = vadd.f32 %v2037, %v2056
    %2058 = vdwg.mxu0
    %v2059 = vxor.u32 %v2057, 2147483648
    %v2060 = vmul.f32 %v2059, 1.442695
    %v2061 = vpow.pop %v2060
    %v2062 = vadd.f32 %v2061, 1.0
    %v2063 = vrcp.pop %v2062
    %v2064 = vmul.f32 %v2062, %v2063
    %v2065 = vsub.f32 1.0, %v2064
    %v2066 = vmul.f32 %v2063, %v2065
    %v2067 = vadd.f32 %v2063, %v2066
    %vm2068 = vweird.f32 %v2062
    %vm2069 = vweird.f32 %v2063
    %vm2070 = vmor %vm2068, %vm2069
    %v2071 = vsel %vm2070, %v2063, %v2067
    %v2072 = vand.u32 2147483647, %v2062
    %vm2073 = vcmp.eq.f32.partialorder %v2072, 8.507059e+37
    %v2074 = vand.u32 %v2062, 2147483648
    %v2075 = vor.u32 1.1754944e-38, %v2074
    %v2076 = vsel %vm2073, %v2075, %v2071
    %v2077 = vmul.f32 1.0, %v2076
    %v2078 = vsub.f32 1.0, %v2077
    %2080 = vrot.lane.b32.xlu0 %v2078, 127
    %v2081 = vpop.permute.xlu0 %2080
    %v2083 = vmul.f32 %v2078, %v2081
    %2084 = vrot.lane.b32.xlu0 %v2078, 126
    %v2085 = vpop.permute.xlu0 %2084
    %v2087 = vmul.f32 %v2083, %v2085
    %2088 = vrot.lane.b32.xlu0 %v2078, 125
    %v2089 = vpop.permute.xlu0 %2088
    %v2091 = vmul.f32 %v2087, %v2089
    %2093 = vrot.lane.b32.xlu0 %v2083, 1
    %v2094 = vpop.permute.xlu0 %2093
    %2097 = vrot.lane.b32.xlu0 %v2087, 2
    %v2098 = vpop.permute.xlu0 %2097
    %2101 = vrot.lane.b32.xlu0 %v2091, 3
    %v2102 = vpop.permute.xlu0 %2101
    %vm2104 = vcmask 7168
    %v2105 = vsel %vm2104, %v2078, %v2094
    %vm2106 = vcmask 15360
    %v2107 = vsel %vm2106, %v2105, %v2098
    %vm2108 = vcmask 23552
    %v2109 = vsel %vm2108, %v2107, %v2102
    %vm2110 = vcmask 25600
    %v2111 = vsel %vm2110, %v2109, 0.0
    %2112 = vadd.xlane.f32.xlu0 %v2111
    %v2113 = vpop.xlane.xlu0 %2112
    %v2114 = vsub.f32 0.0, %v2113
    %2116 = vrot.lane.b32.xlu0 %v2109, 4
    %v2117 = vpop.permute.xlu0 %2116
    %vm2119 = vcmask 31744
    %v2120 = vsel %vm2119, %v2077, %v2117
    %vm2121 = vcmask 64512
    %v2122 = vsel %vm2121, %v2120, %v2114
    %vm2123 = vcmask 66560
    %2124 = vst.msk [vmem:[%s7] sm:$0x3] %vm2123, %v2122
    %v2125 = vlaneseq
    %v2126 = vand.u32 %v2125, 127
    %v2127 = vsel %vm2110, %v2057, -inf
    %2128 = vmax.xlane.f32.xlu0 %v2127
    %v2129 = vpop.xlane.xlu0 %2128
    %vm2130 = vcmp.eq.f32.partialorder %v2057, %v2129
    %v2131 = vsel %vm2130, %v2126, 4
    %v2132 = vsel %vm2110, %v2131, 2147483647
    %v2133 = vand.u32 %v2132, 65535
    %v2134 = vshra.s32 %v2132, 16
    %v2135 = vcvt.s32.f32 %v2133
    %v2136 = vcvt.s32.f32 %v2134
    %2137 = vmin.xlane.f32.xlu0 %v2136
    %v2138 = vpop.xlane.xlu0 %2137
    %vm2139 = vcmp.eq.f32.partialorder %v2136, %v2138
    %v2140 = vsel %vm2139, %v2135, inf
    %2141 = vmin.xlane.f32.xlu0 %v2140
    %v2142 = vpop.xlane.xlu0 %2141
    %v2143 = vcvt.f32.s32 %v2142
    %v2144 = vcvt.f32.s32 %v2138
    %v2145 = vshll.u32 %v2144, 16
    %v2146 = vadd.s32 %v2145, %v2143
    %vm2147 = vcmask 1024
    %2148 = vst.msk [vmem:[%s8] sm:$0x3] %vm2147, %v2146
    // Predicated region
    $region54: #{_mil_sum_fc_surv_impl.1} parent=1 // pred_check
      _
    $region55: #{_mil_sum_fc_surv_impl.1} parent=1 // pred_check_branch
      %2150 = sbr.rel (0) target = $region57
    $region56: #{_mil_sum_fc_surv_impl.1} parent=1 // pred_region
      _
    $region57: #{_mil_sum_fc_surv_impl.1} parent=1 // pred_fallthru
      _
    // Predicated region
    $region58: #{_mil_sum_fc_surv_impl.1} parent=1 // pred_check
      _
    $region59: #{_mil_sum_fc_surv_impl.1} parent=1 // pred_check_branch
      %2152 = sbr.rel (0) target = $region61
    $region60: #{_mil_sum_fc_surv_impl.1} parent=1 // pred_region
      _
    $region61: #{_mil_sum_fc_surv_impl.1} parent=1 // pred_fallthru
      _
    // Predicated region
    $region62: #{_mil_sum_fc_surv_impl.1} parent=1 // pred_check
      _
    $region63: #{_mil_sum_fc_surv_impl.1} parent=1 // pred_check_branch
      %2154 = sbr.rel (0) target = $region65
    $region64: #{_mil_sum_fc_surv_impl.1} parent=1 // pred_region
      _
    $region65: #{_mil_sum_fc_surv_impl.1} parent=1 // pred_fallthru
      _
    // Predicated region
    $region66: #{_mil_sum_fc_surv_impl.1} parent=1 // pred_check
      _
    $region67: #{_mil_sum_fc_surv_impl.1} parent=1 // pred_check_branch
      %2156 = sbr.rel (0) target = $region69
    $region68: #{_mil_sum_fc_surv_impl.1} parent=1 // pred_region
      _
    $region69: #{_mil_sum_fc_surv_impl.1} parent=1 // pred_fallthru
      _
    %2157 = vsyncpa [#allocation3], 1
    %2158 = vsyncpa [#allocation5], 1
    %2159 = vsyncpa [#allocation8], 1
    %2160 = vsyncpa [#allocation11], 1

</llo_original>
